<compile_context>
chip_gen: v7x
topology: tpu7x:2x2x1
jax: 0.10.0
libtpu: 0.0.40
codegen_flags: <defaults>
</compile_context>

<pallas_src>
import functools
import numpy as np
import jax
import jax.numpy as jnp
from jax import lax
from jax.experimental import pallas as pl
from jax.experimental.pallas import tpu as pltpu

LANE = 128


def _round_up(x, m):
    return (x + m - 1) // m * m


# ---------------------------------------------------------------------------
# Fused kernel: one batch element per grid step.
#   x      : (N, CIN)  bf16 padded input
#   w1     : (CIN, UP) bf16, b1 : (1, UP) f32
#   wq/wk/wv : (UP, 128) bf16 head-packed (head h -> lanes [h*hd,(h+1)*hd)); wq pre-scaled
#   bq/bk/bv : (1, 128) f32  (bq pre-scaled)
#   bias   : (n_head, N, N) bf16  rpb with -1e30 at out-of-neighborhood positions
#   wproj  : (128, UP) bf16, bproj : (1, UP) f32
# ---------------------------------------------------------------------------
def natten_fused_kernel(x_ref, w1_ref, b1_ref, wq_ref, wk_ref, wv_ref,
                        bq_ref, bk_ref, bv_ref, bias_ref, wproj_ref, bproj_ref,
                        o_ref, *, n_head, hd, n_layers):
    f32, bf16 = jnp.float32, jnp.bfloat16
    N = x_ref.shape[0]
    HDP = wq_ref.shape[1]                                    # 128 (head-packed lane dim)

    # ---- linear + ReLU (padded lanes >= n_unit stay exactly zero by construction) ----
    feat = jnp.maximum(
        jnp.dot(x_ref[...], w1_ref[...], preferred_element_type=f32) + b1_ref[...],
        0.0)                                                 # (N, UP) f32

    lane = lax.broadcasted_iota(jnp.int32, (1, HDP), 1)      # hoisted out of all loops

    # ---- n_layers NA2D layers with SHARED weights; feat never leaves VMEM ----
    for _ in range(n_layers):
        fb = feat.astype(bf16)
        q = (jnp.dot(fb, wq_ref[...], preferred_element_type=f32) + bq_ref[...]).astype(bf16)
        k = (jnp.dot(fb, wk_ref[...], preferred_element_type=f32) + bk_ref[...]).astype(bf16)
        v = (jnp.dot(fb, wv_ref[...], preferred_element_type=f32) + bv_ref[...]).astype(bf16)

        def head_body(h, o_acc):
            mh = (lane >= h * hd) & (lane < (h + 1) * hd)    # (1, HDP) head lane mask
            qh = jnp.where(mh, q, jnp.zeros_like(q))         # zero other heads' lanes
            s = lax.dot_general(qh, k, (((1,), (1,)), ((), ())),
                                preferred_element_type=f32)  # (N, N) per-head scores
            s = s + bias_ref[h].astype(f32)                  # rpb + neighborhood mask
            s = s - jnp.max(s, axis=-1, keepdims=True)
            p = jnp.exp(s)
            inv = pl.reciprocal(jnp.sum(p, axis=-1, keepdims=True), approx=True)
            oh = jnp.dot(p.astype(bf16), v, preferred_element_type=f32) * inv
            return o_acc + jnp.where(mh, oh, 0.0)            # keep only head h's lanes

        o_acc = lax.fori_loop(0, n_head, head_body, jnp.zeros((N, HDP), f32))

        feat = jnp.dot(o_acc.astype(bf16), wproj_ref[...],
                       preferred_element_type=f32) + bproj_ref[...]   # (N, UP) f32

    o_ref[...] = feat


# ---------------------------------------------------------------------------
# Dense relative-position-bias table with the clamped-window validity mask folded in.
# For natten's clamped windows the bias index is purely relative:
#   rpb[h, a - i + K - 1, b - j + K - 1]; invalid (q, k) pairs get -1e30 (bf16-safe).
# ---------------------------------------------------------------------------
def build_bias_dense(rpb, H, W, K):
    nb = K // 2
    rpb = np.asarray(rpb, dtype=np.float32)
    heads = rpb.shape[0]

    def axis_tables(L):
        q = np.arange(L)
        k = np.arange(L)
        start = np.clip(q - nb, 0, L - K)                                    # (L,)
        valid = (k[None, :] >= start[:, None]) & (k[None, :] < start[:, None] + K)
        rel = np.clip(k[None, :] - q[:, None] + (K - 1), 0, 2 * K - 2)
        return valid, rel

    vi, ri = axis_tables(H)                                                   # (H, H)
    vj, rj = axis_tables(W)                                                   # (W, W)
    dense = rpb[:, ri[:, None, :, None], rj[None, :, None, :]]                # (h,H,W,H,W)
    valid = vi[:, None, :, None] & vj[None, :, None, :]                       # (H,W,H,W)
    dense = np.where(valid[None], dense, np.float32(-1e30))
    return jnp.asarray(dense.reshape(heads, H * W, H * W), dtype=jnp.bfloat16)


# ---------------------------------------------------------------------------
# Wrapper
# ---------------------------------------------------------------------------
def natten_forward(x, params, *, window, n_head, n_layers):
    """x: (B, H, W, Cin) f32 -> (B, H, W, n_unit) f32."""
    B, H, W, Cin = x.shape
    N = H * W
    K = window
    assert K <= min(H, W), "window must be <= min(H, W)"
    U = params["w1"].shape[1]                      # real n_unit (24)
    hd = U // n_head                               # real head dim (6)
    scale = float(hd) ** -0.5

    CIN = _round_up(Cin, LANE)                     # 21  -> 128
    UP = _round_up(U, LANE)                        # 24  -> 128
    HDP = LANE                                     # head-packed q/k/v lane width

    f32, bf16 = jnp.float32, jnp.bfloat16

    # ---- pad inputs / repack weights (zero padding is exact end-to-end) -------------
    x_pad = jnp.zeros((B, N, CIN), f32).at[:, :, :Cin].set(x.reshape(B, N, Cin)).astype(bf16)

    w1 = jnp.zeros((CIN, UP), f32).at[:Cin, :U].set(params["w1"]).astype(bf16)
    b1 = jnp.zeros((1, UP), f32).at[0, :U].set(params["b1"].reshape(-1))

    # natten's fused qkv weight columns are laid out (3, heads, head_dim); a real
    # checkpoint must follow this exact layout (and nn.Linear weights are (out, in),
    # i.e. would need a transpose before this repack).
    wqkv = params["wqkv"].reshape(U, 3, n_head, hd)
    bqkv = params["bqkv"].reshape(3, n_head, hd)

    def pack_w(sel, mult=1.0):
        w = jnp.zeros((UP, HDP), f32)
        w = w.at[:U, :U].set(wqkv[:, sel].reshape(U, n_head * hd) * mult)
        return w.astype(bf16)

    def pack_b(sel, mult=1.0):
        return jnp.zeros((1, HDP), f32).at[0, :U].set(bqkv[sel].reshape(-1) * mult)

    # attention scale folded into the query projection
    wq, bq = pack_w(0, scale), pack_b(0, scale)
    wk, bk = pack_w(1), pack_b(1)
    wv, bv = pack_w(2), pack_b(2)

    # o_acc lanes are head-major (lane h*hd+d == head h, dim d), so wproj packs directly.
    wproj = jnp.zeros((HDP, UP), f32).at[:U, :U].set(params["wproj"]).astype(bf16)
    bproj = jnp.zeros((1, UP), f32).at[0, :U].set(params["bproj"].reshape(-1))

    bias = build_bias_dense(params["rpb"], H, W, K)      # (n_head, N, N) bf16, mask folded

    kernel = functools.partial(natten_fused_kernel, n_head=n_head, hd=hd,
                               n_layers=n_layers)

    flops = int(B * (2 * N * CIN * UP
                     + n_layers * (6 * N * UP * HDP
                                   + n_head * 4 * N * N * HDP
                                   + 2 * N * HDP * UP)))
    bytes_accessed = int(x_pad.size * 2 + B * N * UP * 4
                         + (w1.size + wq.size + wk.size + wv.size + wproj.size) * 2
                         + (b1.size + bq.size + bk.size + bv.size + bproj.size) * 4
                         + bias.size * 2)
    cost = pl.CostEstimate(flops=flops,
                           transcendentals=int(B * n_layers * n_head * N * N),
                           bytes_accessed=bytes_accessed)

    out = pl.pallas_call(
        kernel,
        out_shape=jax.ShapeDtypeStruct((B, N, UP), jnp.float32),
        grid_spec=pltpu.PrefetchScalarGridSpec(
            num_scalar_prefetch=0,
            grid=(B,),                                              # >=2 steps feeds both v7x TCs
            in_specs=[
                pl.BlockSpec((None, N, CIN), lambda b: (b, 0, 0)),   # x (one batch)
                pl.BlockSpec((CIN, UP), lambda b: (0, 0)),           # w1
                pl.BlockSpec((1, UP), lambda b: (0, 0)),             # b1
                pl.BlockSpec((UP, HDP), lambda b: (0, 0)),           # wq (pre-scaled)
                pl.BlockSpec((UP, HDP), lambda b: (0, 0)),           # wk
                pl.BlockSpec((UP, HDP), lambda b: (0, 0)),           # wv
                pl.BlockSpec((1, HDP), lambda b: (0, 0)),            # bq (pre-scaled)
                pl.BlockSpec((1, HDP), lambda b: (0, 0)),            # bk
                pl.BlockSpec((1, HDP), lambda b: (0, 0)),            # bv
                pl.BlockSpec((n_head, N, N), lambda b: (0, 0, 0)),   # bias (rpb + mask)
                pl.BlockSpec((HDP, UP), lambda b: (0, 0)),           # wproj
                pl.BlockSpec((1, UP), lambda b: (0, 0)),             # bproj
            ],
            out_specs=pl.BlockSpec((None, N, UP), lambda b: (b, 0, 0)),
        ),
        compiler_params=pltpu.CompilerParams(
            dimension_semantics=("parallel",),
            vmem_limit_bytes=32 * 1024 * 1024),
        cost_estimate=cost,
    )(x_pad, w1, b1, wq, wk, wv, bq, bk, bv, bias, wproj, bproj)

    return out[..., :U].reshape(B, H, W, U)


# ---------------------------------------------------------------------------
# Random params in the module's native (unpadded, fused-qkv) layout.
# ---------------------------------------------------------------------------
def init_params(key, hidden_per_pitch, n_unit, n_head, window):
    cin = hidden_per_pitch + 5
    ks = jax.random.split(key, 8)
    f32 = jnp.float32
    return {
        "w1": jax.random.normal(ks[0], (cin, n_unit), f32) * 0.1,
        "b1": jax.random.normal(ks[1], (n_unit,), f32) * 0.01,
        "wqkv": jax.random.normal(ks[2], (n_unit, 3 * n_unit), f32) * 0.1,
        "bqkv": jax.random.normal(ks[3], (3 * n_unit,), f32) * 0.01,
        "rpb": jax.random.normal(ks[4], (n_head, 2 * window - 1, 2 * window - 1),
                                 f32) * 0.02,
        "wproj": jax.random.normal(ks[5], (n_unit, n_unit), f32) * 0.1,
        "bproj": jax.random.normal(ks[6], (n_unit,), f32) * 0.01,
    }


if __name__ == "__main__":
    B, Hs, Ws = 2, 8, 8
    hidden_per_pitch = 16          # -> input features = 21
    n_unit, n_head, n_layers = 24, 4, 2
    window = 5                     # kernel_size (must be <= min(H, W))

    key = jax.random.PRNGKey(0)
    kx, kp = jax.random.split(key)
    x = jax.random.normal(kx, (B, Hs, Ws, hidden_per_pitch + 5), jnp.float32)
    params = init_params(kp, hidden_per_pitch, n_unit, n_head, window)

    out = natten_forward(x, params, window=window, n_head=n_head,
                         n_layers=n_layers)
    out = jax.block_until_ready(out)

    assert out.shape == (B, Hs, Ws, n_unit)
    assert bool(jnp.all(jnp.isfinite(out)))
    print("KERNEL_OK")
</pallas_src>

<mosaic_0001>
module attributes {stable_mosaic.version = 11 : i64} {
  func.func @natten_fused_kernel(%arg0: i32, %arg1: memref<1x64x128xbf16, #tpu.memory_space<vmem>>, %arg2: memref<128x128xbf16, #tpu.memory_space<vmem>>, %arg3: memref<1x128xf32, #tpu.memory_space<vmem>>, %arg4: memref<128x128xbf16, #tpu.memory_space<vmem>>, %arg5: memref<128x128xbf16, #tpu.memory_space<vmem>>, %arg6: memref<128x128xbf16, #tpu.memory_space<vmem>>, %arg7: memref<1x128xf32, #tpu.memory_space<vmem>>, %arg8: memref<1x128xf32, #tpu.memory_space<vmem>>, %arg9: memref<1x128xf32, #tpu.memory_space<vmem>>, %arg10: memref<4x64x64xbf16, #tpu.memory_space<vmem>>, %arg11: memref<128x128xbf16, #tpu.memory_space<vmem>>, %arg12: memref<1x128xf32, #tpu.memory_space<vmem>>, %arg13: memref<1x64x128xf32, #tpu.memory_space<vmem>>) attributes {dimension_semantics = [#tpu.dimension_semantics<parallel>], iteration_bounds = array<i64: 2>, scalar_prefetch = 0 : i64, scratch_operands = 0 : i64, tpu.core_type = #tpu.core_type<tc>, window_params = [{transform_indices = @transform_0, window_bounds = array<i64: 1, 64, 128>}, {pipeline_mode = #tpu.pipeline_mode<synchronous>, transform_indices = @transform_1, window_bounds = array<i64: 128, 128>}, {pipeline_mode = #tpu.pipeline_mode<synchronous>, transform_indices = @transform_2, window_bounds = array<i64: 1, 128>}, {pipeline_mode = #tpu.pipeline_mode<synchronous>, transform_indices = @transform_3, window_bounds = array<i64: 128, 128>}, {pipeline_mode = #tpu.pipeline_mode<synchronous>, transform_indices = @transform_4, window_bounds = array<i64: 128, 128>}, {pipeline_mode = #tpu.pipeline_mode<synchronous>, transform_indices = @transform_5, window_bounds = array<i64: 128, 128>}, {pipeline_mode = #tpu.pipeline_mode<synchronous>, transform_indices = @transform_6, window_bounds = array<i64: 1, 128>}, {pipeline_mode = #tpu.pipeline_mode<synchronous>, transform_indices = @transform_7, window_bounds = array<i64: 1, 128>}, {pipeline_mode = #tpu.pipeline_mode<synchronous>, transform_indices = @transform_8, window_bounds = array<i64: 1, 128>}, {pipeline_mode = #tpu.pipeline_mode<synchronous>, transform_indices = @transform_9, window_bounds = array<i64: 4, 64, 64>}, {pipeline_mode = #tpu.pipeline_mode<synchronous>, transform_indices = @transform_10, window_bounds = array<i64: 128, 128>}, {pipeline_mode = #tpu.pipeline_mode<synchronous>, transform_indices = @transform_11, window_bounds = array<i64: 1, 128>}, {transform_indices = @transform_12, window_bounds = array<i64: 1, 64, 128>}]} {
    %c0 = arith.constant 0 : index
    %c0_0 = arith.constant 0 : index
    %c0_1 = arith.constant 0 : index
    %0 = vector.load %arg1[%c0, %c0_0, %c0_1] : memref<1x64x128xbf16, #tpu.memory_space<vmem>>, vector<1x64x128xbf16>
    %1 = vector.shape_cast %0 : vector<1x64x128xbf16> to vector<64x128xbf16>
    %c0_2 = arith.constant 0 : index
    %c0_3 = arith.constant 0 : index
    %2 = vector.load %arg2[%c0_2, %c0_3] : memref<128x128xbf16, #tpu.memory_space<vmem>>, vector<128x128xbf16>
    %cst = arith.constant dense<0.000000e+00> : vector<64x128xf32>
    %3 = tpu.matmul %1, %2, %cst {dimension_numbers = #tpu.dot_dimension_numbers<[1], [0], [0], [1], [0, 0, 1, 1], [], []>} : vector<64x128xbf16>, vector<128x128xbf16>, vector<64x128xf32> -> vector<64x128xf32>
    %c0_4 = arith.constant 0 : index
    %c0_5 = arith.constant 0 : index
    %4 = vector.load %arg3[%c0_4, %c0_5] : memref<1x128xf32, #tpu.memory_space<vmem>>, vector<1x128xf32>
    %5 = vector.broadcast %4 : vector<1x128xf32> to vector<64x128xf32>
    %6 = arith.addf %3, %5 : vector<64x128xf32>
    %cst_6 = arith.constant 0.000000e+00 : f32
    %7 = vector.broadcast %cst_6 : f32 to vector<64x128xf32>
    %8 = arith.maximumf %6, %7 : vector<64x128xf32>
    %9 = tpu.iota {dimensions = array<i32: 1>} : vector<1x128xi32>
    %10 = arith.truncf %8 : vector<64x128xf32> to vector<64x128xbf16>
    %c0_7 = arith.constant 0 : index
    %c0_8 = arith.constant 0 : index
    %11 = vector.load %arg4[%c0_7, %c0_8] : memref<128x128xbf16, #tpu.memory_space<vmem>>, vector<128x128xbf16>
    %cst_9 = arith.constant dense<0.000000e+00> : vector<64x128xf32>
    %12 = tpu.matmul %10, %11, %cst_9 {dimension_numbers = #tpu.dot_dimension_numbers<[1], [0], [0], [1], [0, 0, 1, 1], [], []>} : vector<64x128xbf16>, vector<128x128xbf16>, vector<64x128xf32> -> vector<64x128xf32>
    %c0_10 = arith.constant 0 : index
    %c0_11 = arith.constant 0 : index
    %13 = vector.load %arg7[%c0_10, %c0_11] : memref<1x128xf32, #tpu.memory_space<vmem>>, vector<1x128xf32>
    %14 = vector.broadcast %13 : vector<1x128xf32> to vector<64x128xf32>
    %15 = arith.addf %12, %14 : vector<64x128xf32>
    %16 = arith.truncf %15 : vector<64x128xf32> to vector<64x128xbf16>
    %c0_12 = arith.constant 0 : index
    %c0_13 = arith.constant 0 : index
    %17 = vector.load %arg5[%c0_12, %c0_13] : memref<128x128xbf16, #tpu.memory_space<vmem>>, vector<128x128xbf16>
    %cst_14 = arith.constant dense<0.000000e+00> : vector<64x128xf32>
    %18 = tpu.matmul %10, %17, %cst_14 {dimension_numbers = #tpu.dot_dimension_numbers<[1], [0], [0], [1], [0, 0, 1, 1], [], []>} : vector<64x128xbf16>, vector<128x128xbf16>, vector<64x128xf32> -> vector<64x128xf32>
    %c0_15 = arith.constant 0 : index
    %c0_16 = arith.constant 0 : index
    %19 = vector.load %arg8[%c0_15, %c0_16] : memref<1x128xf32, #tpu.memory_space<vmem>>, vector<1x128xf32>
    %20 = vector.broadcast %19 : vector<1x128xf32> to vector<64x128xf32>
    %21 = arith.addf %18, %20 : vector<64x128xf32>
    %22 = arith.truncf %21 : vector<64x128xf32> to vector<64x128xbf16>
    %c0_17 = arith.constant 0 : index
    %c0_18 = arith.constant 0 : index
    %23 = vector.load %arg6[%c0_17, %c0_18] : memref<128x128xbf16, #tpu.memory_space<vmem>>, vector<128x128xbf16>
    %cst_19 = arith.constant dense<0.000000e+00> : vector<64x128xf32>
    %24 = tpu.matmul %10, %23, %cst_19 {dimension_numbers = #tpu.dot_dimension_numbers<[1], [0], [0], [1], [0, 0, 1, 1], [], []>} : vector<64x128xbf16>, vector<128x128xbf16>, vector<64x128xf32> -> vector<64x128xf32>
    %c0_20 = arith.constant 0 : index
    %c0_21 = arith.constant 0 : index
    %25 = vector.load %arg9[%c0_20, %c0_21] : memref<1x128xf32, #tpu.memory_space<vmem>>, vector<1x128xf32>
    %26 = vector.broadcast %25 : vector<1x128xf32> to vector<64x128xf32>
    %27 = arith.addf %24, %26 : vector<64x128xf32>
    %28 = arith.truncf %27 : vector<64x128xf32> to vector<64x128xbf16>
    %cst_22 = arith.constant 0.000000e+00 : f32
    %29 = vector.broadcast %cst_22 : f32 to vector<64x128xf32>
    %c0_i32 = arith.constant 0 : i32
    %c4_i32 = arith.constant 4 : i32
    %30 = arith.addi %c0_i32, %c4_i32 : i32
    %c1_i32 = arith.constant 1 : i32
    %31 = scf.for %arg14 = %c0_i32 to %30 step %c1_i32 iter_args(%arg15 = %29) -> (vector<64x128xf32>)  : i32 {
      %c6_i32 = arith.constant 6 : i32
      %69 = arith.muli %arg14, %c6_i32 : i32
      %70 = vector.broadcast %69 : i32 to vector<1x128xi32>
      %71 = arith.cmpi sge, %9, %70 : vector<1x128xi32>
      %c1_i32_57 = arith.constant 1 : i32
      %72 = arith.addi %arg14, %c1_i32_57 : i32
      %c6_i32_58 = arith.constant 6 : i32
      %73 = arith.muli %72, %c6_i32_58 : i32
      %74 = vector.broadcast %73 : i32 to vector<1x128xi32>
      %75 = arith.cmpi slt, %9, %74 : vector<1x128xi32>
      %76 = arith.andi %71, %75 : vector<1x128xi1>
      %cst_59 = arith.constant 0.000000e+00 : bf16
      %77 = vector.broadcast %cst_59 : bf16 to vector<64x128xbf16>
      %78 = vector.shape_cast %76 : vector<1x128xi1> to vector<1x128xi1>
      %79 = vector.broadcast %78 : vector<1x128xi1> to vector<64x128xi1>
      %80 = arith.select %79, %16, %77 : vector<64x128xi1>, vector<64x128xbf16>
      %cst_60 = arith.constant dense<0.000000e+00> : vector<64x64xf32>
      %81 = tpu.matmul %80, %22, %cst_60 {dimension_numbers = #tpu.dot_dimension_numbers<[1], [1], [0], [0], [0, 0, 1, 0], [], []>} : vector<64x128xbf16>, vector<64x128xbf16>, vector<64x64xf32> -> vector<64x64xf32>
      %82 = arith.index_cast %arg14 : i32 to index
      %c0_61 = arith.constant 0 : index
      %c0_62 = arith.constant 0 : index
      %83 = vector.load %arg10[%82, %c0_61, %c0_62] : memref<4x64x64xbf16, #tpu.memory_space<vmem>>, vector<1x64x64xbf16>
      %84 = vector.shape_cast %83 : vector<1x64x64xbf16> to vector<64x64xbf16>
      %85 = arith.extf %84 : vector<64x64xbf16> to vector<64x64xf32>
      %86 = arith.addf %81, %85 : vector<64x64xf32>
      %cst_63 = arith.constant dense<0xFF800000> : vector<64xf32>
      %87 = vector.multi_reduction <maximumf>, %86, %cst_63 [1] : vector<64x64xf32> to vector<64xf32>
      %88 = vector.shape_cast %87 : vector<64xf32> to vector<64x1xf32>
      %89 = vector.broadcast %88 : vector<64x1xf32> to vector<64x64xf32>
      %90 = arith.subf %86, %89 : vector<64x64xf32>
      %91 = math.exp %90 : vector<64x64xf32>
      %cst_64 = arith.constant dense<0.000000e+00> : vector<64xf32>
      %92 = vector.multi_reduction <add>, %91, %cst_64 [1] : vector<64x64xf32> to vector<64xf32>
      %93 = vector.shape_cast %92 : vector<64xf32> to vector<64x1xf32>
      %94 = tpu.reciprocal %93 {approx = true} : vector<64x1xf32> -> vector<64x1xf32>
      %95 = arith.truncf %91 : vector<64x64xf32> to vector<64x64xbf16>
      %cst_65 = arith.constant dense<0.000000e+00> : vector<64x128xf32>
      %96 = tpu.matmul %95, %28, %cst_65 {dimension_numbers = #tpu.dot_dimension_numbers<[1], [0], [0], [1], [0, 0, 1, 1], [], []>} : vector<64x64xbf16>, vector<64x128xbf16>, vector<64x128xf32> -> vector<64x128xf32>
      %97 = vector.broadcast %94 : vector<64x1xf32> to vector<64x128xf32>
      %98 = arith.mulf %96, %97 : vector<64x128xf32>
      %cst_66 = arith.constant 0.000000e+00 : f32
      %99 = vector.shape_cast %76 : vector<1x128xi1> to vector<1x128xi1>
      %100 = vector.broadcast %99 : vector<1x128xi1> to vector<64x128xi1>
      %101 = vector.broadcast %cst_66 : f32 to vector<64x128xf32>
      %102 = arith.select %100, %98, %101 : vector<64x128xi1>, vector<64x128xf32>
      %103 = arith.addf %arg15, %102 : vector<64x128xf32>
      scf.yield %103 : vector<64x128xf32>
    }
    %c4_i32_23 = arith.constant 4 : i32
    %32 = arith.truncf %31 : vector<64x128xf32> to vector<64x128xbf16>
    %c0_24 = arith.constant 0 : index
    %c0_25 = arith.constant 0 : index
    %33 = vector.load %arg11[%c0_24, %c0_25] : memref<128x128xbf16, #tpu.memory_space<vmem>>, vector<128x128xbf16>
    %cst_26 = arith.constant dense<0.000000e+00> : vector<64x128xf32>
    %34 = tpu.matmul %32, %33, %cst_26 {dimension_numbers = #tpu.dot_dimension_numbers<[1], [0], [0], [1], [0, 0, 1, 1], [], []>} : vector<64x128xbf16>, vector<128x128xbf16>, vector<64x128xf32> -> vector<64x128xf32>
    %c0_27 = arith.constant 0 : index
    %c0_28 = arith.constant 0 : index
    %35 = vector.load %arg12[%c0_27, %c0_28] : memref<1x128xf32, #tpu.memory_space<vmem>>, vector<1x128xf32>
    %36 = vector.broadcast %35 : vector<1x128xf32> to vector<64x128xf32>
    %37 = arith.addf %34, %36 : vector<64x128xf32>
    %38 = arith.truncf %37 : vector<64x128xf32> to vector<64x128xbf16>
    %c0_29 = arith.constant 0 : index
    %c0_30 = arith.constant 0 : index
    %39 = vector.load %arg4[%c0_29, %c0_30] : memref<128x128xbf16, #tpu.memory_space<vmem>>, vector<128x128xbf16>
    %cst_31 = arith.constant dense<0.000000e+00> : vector<64x128xf32>
    %40 = tpu.matmul %38, %39, %cst_31 {dimension_numbers = #tpu.dot_dimension_numbers<[1], [0], [0], [1], [0, 0, 1, 1], [], []>} : vector<64x128xbf16>, vector<128x128xbf16>, vector<64x128xf32> -> vector<64x128xf32>
    %c0_32 = arith.constant 0 : index
    %c0_33 = arith.constant 0 : index
    %41 = vector.load %arg7[%c0_32, %c0_33] : memref<1x128xf32, #tpu.memory_space<vmem>>, vector<1x128xf32>
    %42 = vector.broadcast %41 : vector<1x128xf32> to vector<64x128xf32>
    %43 = arith.addf %40, %42 : vector<64x128xf32>
    %44 = arith.truncf %43 : vector<64x128xf32> to vector<64x128xbf16>
    %c0_34 = arith.constant 0 : index
    %c0_35 = arith.constant 0 : index
    %45 = vector.load %arg5[%c0_34, %c0_35] : memref<128x128xbf16, #tpu.memory_space<vmem>>, vector<128x128xbf16>
    %cst_36 = arith.constant dense<0.000000e+00> : vector<64x128xf32>
    %46 = tpu.matmul %38, %45, %cst_36 {dimension_numbers = #tpu.dot_dimension_numbers<[1], [0], [0], [1], [0, 0, 1, 1], [], []>} : vector<64x128xbf16>, vector<128x128xbf16>, vector<64x128xf32> -> vector<64x128xf32>
    %c0_37 = arith.constant 0 : index
    %c0_38 = arith.constant 0 : index
    %47 = vector.load %arg8[%c0_37, %c0_38] : memref<1x128xf32, #tpu.memory_space<vmem>>, vector<1x128xf32>
    %48 = vector.broadcast %47 : vector<1x128xf32> to vector<64x128xf32>
    %49 = arith.addf %46, %48 : vector<64x128xf32>
    %50 = arith.truncf %49 : vector<64x128xf32> to vector<64x128xbf16>
    %c0_39 = arith.constant 0 : index
    %c0_40 = arith.constant 0 : index
    %51 = vector.load %arg6[%c0_39, %c0_40] : memref<128x128xbf16, #tpu.memory_space<vmem>>, vector<128x128xbf16>
    %cst_41 = arith.constant dense<0.000000e+00> : vector<64x128xf32>
    %52 = tpu.matmul %38, %51, %cst_41 {dimension_numbers = #tpu.dot_dimension_numbers<[1], [0], [0], [1], [0, 0, 1, 1], [], []>} : vector<64x128xbf16>, vector<128x128xbf16>, vector<64x128xf32> -> vector<64x128xf32>
    %c0_42 = arith.constant 0 : index
    %c0_43 = arith.constant 0 : index
    %53 = vector.load %arg9[%c0_42, %c0_43] : memref<1x128xf32, #tpu.memory_space<vmem>>, vector<1x128xf32>
    %54 = vector.broadcast %53 : vector<1x128xf32> to vector<64x128xf32>
    %55 = arith.addf %52, %54 : vector<64x128xf32>
    %56 = arith.truncf %55 : vector<64x128xf32> to vector<64x128xbf16>
    %cst_44 = arith.constant 0.000000e+00 : f32
    %57 = vector.broadcast %cst_44 : f32 to vector<64x128xf32>
    %c0_i32_45 = arith.constant 0 : i32
    %c4_i32_46 = arith.constant 4 : i32
    %58 = arith.addi %c0_i32_45, %c4_i32_46 : i32
    %c1_i32_47 = arith.constant 1 : i32
    %59 = scf.for %arg14 = %c0_i32_45 to %58 step %c1_i32_47 iter_args(%arg15 = %57) -> (vector<64x128xf32>)  : i32 {
      %c6_i32 = arith.constant 6 : i32
      %69 = arith.muli %arg14, %c6_i32 : i32
      %70 = vector.broadcast %69 : i32 to vector<1x128xi32>
      %71 = arith.cmpi sge, %9, %70 : vector<1x128xi32>
      %c1_i32_57 = arith.constant 1 : i32
      %72 = arith.addi %arg14, %c1_i32_57 : i32
      %c6_i32_58 = arith.constant 6 : i32
      %73 = arith.muli %72, %c6_i32_58 : i32
      %74 = vector.broadcast %73 : i32 to vector<1x128xi32>
      %75 = arith.cmpi slt, %9, %74 : vector<1x128xi32>
      %76 = arith.andi %71, %75 : vector<1x128xi1>
      %cst_59 = arith.constant 0.000000e+00 : bf16
      %77 = vector.broadcast %cst_59 : bf16 to vector<64x128xbf16>
      %78 = vector.shape_cast %76 : vector<1x128xi1> to vector<1x128xi1>
      %79 = vector.broadcast %78 : vector<1x128xi1> to vector<64x128xi1>
      %80 = arith.select %79, %44, %77 : vector<64x128xi1>, vector<64x128xbf16>
      %cst_60 = arith.constant dense<0.000000e+00> : vector<64x64xf32>
      %81 = tpu.matmul %80, %50, %cst_60 {dimension_numbers = #tpu.dot_dimension_numbers<[1], [1], [0], [0], [0, 0, 1, 0], [], []>} : vector<64x128xbf16>, vector<64x128xbf16>, vector<64x64xf32> -> vector<64x64xf32>
      %82 = arith.index_cast %arg14 : i32 to index
      %c0_61 = arith.constant 0 : index
      %c0_62 = arith.constant 0 : index
      %83 = vector.load %arg10[%82, %c0_61, %c0_62] : memref<4x64x64xbf16, #tpu.memory_space<vmem>>, vector<1x64x64xbf16>
      %84 = vector.shape_cast %83 : vector<1x64x64xbf16> to vector<64x64xbf16>
      %85 = arith.extf %84 : vector<64x64xbf16> to vector<64x64xf32>
      %86 = arith.addf %81, %85 : vector<64x64xf32>
      %cst_63 = arith.constant dense<0xFF800000> : vector<64xf32>
      %87 = vector.multi_reduction <maximumf>, %86, %cst_63 [1] : vector<64x64xf32> to vector<64xf32>
      %88 = vector.shape_cast %87 : vector<64xf32> to vector<64x1xf32>
      %89 = vector.broadcast %88 : vector<64x1xf32> to vector<64x64xf32>
      %90 = arith.subf %86, %89 : vector<64x64xf32>
      %91 = math.exp %90 : vector<64x64xf32>
      %cst_64 = arith.constant dense<0.000000e+00> : vector<64xf32>
      %92 = vector.multi_reduction <add>, %91, %cst_64 [1] : vector<64x64xf32> to vector<64xf32>
      %93 = vector.shape_cast %92 : vector<64xf32> to vector<64x1xf32>
      %94 = tpu.reciprocal %93 {approx = true} : vector<64x1xf32> -> vector<64x1xf32>
      %95 = arith.truncf %91 : vector<64x64xf32> to vector<64x64xbf16>
      %cst_65 = arith.constant dense<0.000000e+00> : vector<64x128xf32>
      %96 = tpu.matmul %95, %56, %cst_65 {dimension_numbers = #tpu.dot_dimension_numbers<[1], [0], [0], [1], [0, 0, 1, 1], [], []>} : vector<64x64xbf16>, vector<64x128xbf16>, vector<64x128xf32> -> vector<64x128xf32>
      %97 = vector.broadcast %94 : vector<64x1xf32> to vector<64x128xf32>
      %98 = arith.mulf %96, %97 : vector<64x128xf32>
      %cst_66 = arith.constant 0.000000e+00 : f32
      %99 = vector.shape_cast %76 : vector<1x128xi1> to vector<1x128xi1>
      %100 = vector.broadcast %99 : vector<1x128xi1> to vector<64x128xi1>
      %101 = vector.broadcast %cst_66 : f32 to vector<64x128xf32>
      %102 = arith.select %100, %98, %101 : vector<64x128xi1>, vector<64x128xf32>
      %103 = arith.addf %arg15, %102 : vector<64x128xf32>
      scf.yield %103 : vector<64x128xf32>
    }
    %c4_i32_48 = arith.constant 4 : i32
    %60 = arith.truncf %59 : vector<64x128xf32> to vector<64x128xbf16>
    %c0_49 = arith.constant 0 : index
    %c0_50 = arith.constant 0 : index
    %61 = vector.load %arg11[%c0_49, %c0_50] : memref<128x128xbf16, #tpu.memory_space<vmem>>, vector<128x128xbf16>
    %cst_51 = arith.constant dense<0.000000e+00> : vector<64x128xf32>
    %62 = tpu.matmul %60, %61, %cst_51 {dimension_numbers = #tpu.dot_dimension_numbers<[1], [0], [0], [1], [0, 0, 1, 1], [], []>} : vector<64x128xbf16>, vector<128x128xbf16>, vector<64x128xf32> -> vector<64x128xf32>
    %c0_52 = arith.constant 0 : index
    %c0_53 = arith.constant 0 : index
    %63 = vector.load %arg12[%c0_52, %c0_53] : memref<1x128xf32, #tpu.memory_space<vmem>>, vector<1x128xf32>
    %64 = vector.broadcast %63 : vector<1x128xf32> to vector<64x128xf32>
    %65 = arith.addf %62, %64 : vector<64x128xf32>
    %c0_54 = arith.constant 0 : index
    %c0_55 = arith.constant 0 : index
    %c0_56 = arith.constant 0 : index
    %66 = vector.load %arg13[%c0_54, %c0_55, %c0_56] : memref<1x64x128xf32, #tpu.memory_space<vmem>>, vector<1x64x128xf32>
    %67 = vector.shape_cast %66 : vector<1x64x128xf32> to vector<64x128xf32>
    %68 = vector.shape_cast %65 : vector<64x128xf32> to vector<1x64x128xf32>
    tpu.vector_store %arg13[%c0_54, %c0_55, %c0_56], %68 {strides = array<i32>} : memref<1x64x128xf32, #tpu.memory_space<vmem>>, vector<1x64x128xf32>,
    return
  }
  func.func @transform_0(%arg0: i32) -> (i32, i32, i32) {
    %c0_i32 = arith.constant 0 : i32
    %c0_i32_0 = arith.constant 0 : i32
    %c0_i32_1 = arith.constant 0 : i32
    return %arg0, %c0_i32, %c0_i32_0 : i32, i32, i32
  }
  func.func @transform_1(%arg0: i32) -> (i32, i32) {
    %c0_i32 = arith.constant 0 : i32
    %c0_i32_0 = arith.constant 0 : i32
    %c0_i32_1 = arith.constant 0 : i32
    return %c0_i32, %c0_i32_0 : i32, i32
  }
  func.func @transform_2(%arg0: i32) -> (i32, i32) {
    %c0_i32 = arith.constant 0 : i32
    %c0_i32_0 = arith.constant 0 : i32
    %c0_i32_1 = arith.constant 0 : i32
    return %c0_i32, %c0_i32_0 : i32, i32
  }
  func.func @transform_3(%arg0: i32) -> (i32, i32) {
    %c0_i32 = arith.constant 0 : i32
    %c0_i32_0 = arith.constant 0 : i32
    %c0_i32_1 = arith.constant 0 : i32
    return %c0_i32, %c0_i32_0 : i32, i32
  }
  func.func @transform_4(%arg0: i32) -> (i32, i32) {
    %c0_i32 = arith.constant 0 : i32
    %c0_i32_0 = arith.constant 0 : i32
    %c0_i32_1 = arith.constant 0 : i32
    return %c0_i32, %c0_i32_0 : i32, i32
  }
  func.func @transform_5(%arg0: i32) -> (i32, i32) {
    %c0_i32 = arith.constant 0 : i32
    %c0_i32_0 = arith.constant 0 : i32
    %c0_i32_1 = arith.constant 0 : i32
    return %c0_i32, %c0_i32_0 : i32, i32
  }
  func.func @transform_6(%arg0: i32) -> (i32, i32) {
    %c0_i32 = arith.constant 0 : i32
    %c0_i32_0 = arith.constant 0 : i32
    %c0_i32_1 = arith.constant 0 : i32
    return %c0_i32, %c0_i32_0 : i32, i32
  }
  func.func @transform_7(%arg0: i32) -> (i32, i32) {
    %c0_i32 = arith.constant 0 : i32
    %c0_i32_0 = arith.constant 0 : i32
    %c0_i32_1 = arith.constant 0 : i32
    return %c0_i32, %c0_i32_0 : i32, i32
  }
  func.func @transform_8(%arg0: i32) -> (i32, i32) {
    %c0_i32 = arith.constant 0 : i32
    %c0_i32_0 = arith.constant 0 : i32
    %c0_i32_1 = arith.constant 0 : i32
    return %c0_i32, %c0_i32_0 : i32, i32
  }
  func.func @transform_9(%arg0: i32) -> (i32, i32, i32) {
    %c0_i32 = arith.constant 0 : i32
    %c0_i32_0 = arith.constant 0 : i32
    %c0_i32_1 = arith.constant 0 : i32
    %c0_i32_2 = arith.constant 0 : i32
    return %c0_i32, %c0_i32_0, %c0_i32_1 : i32, i32, i32
  }
  func.func @transform_10(%arg0: i32) -> (i32, i32) {
    %c0_i32 = arith.constant 0 : i32
    %c0_i32_0 = arith.constant 0 : i32
    %c0_i32_1 = arith.constant 0 : i32
    return %c0_i32, %c0_i32_0 : i32, i32
  }
  func.func @transform_11(%arg0: i32) -> (i32, i32) {
    %c0_i32 = arith.constant 0 : i32
    %c0_i32_0 = arith.constant 0 : i32
    %c0_i32_1 = arith.constant 0 : i32
    return %c0_i32, %c0_i32_0 : i32, i32
  }
  func.func @transform_12(%arg0: i32) -> (i32, i32, i32) {
    %c0_i32 = arith.constant 0 : i32
    %c0_i32_0 = arith.constant 0 : i32
    %c0_i32_1 = arith.constant 0 : i32
    return %arg0, %c0_i32, %c0_i32_0 : i32, i32, i32
  }
}

</mosaic_0001>

<llo_original>
// kernel: tpu_custom_call.1
$region0: #{tpu_custom_call.1}
  #allocation0 [shape = 'u32[]', space=smem, size = 0x4, offset = 0x4, fixed_abs, tag = 'smem constant byte address 0x4 - core index']
  #allocation1 [shape = 'u32[144,128]{1,0:T(1,128)}', space=vmem, size = 0x12000, scoped, tag = 'internal scratch']
  %s0 = inlined_call_operand.hbm [shape: bf16[2,64,128], index: 0, kind: input, shape index: {}]
  %s1 = inlined_call_operand.hbm [shape: bf16[128,128], index: 1, kind: input, shape index: {}]
  %s2 = inlined_call_operand.vmem [shape: f32[1,128], index: 2, kind: input, shape index: {}]
  %s3 = inlined_call_operand.hbm [shape: bf16[128,128], index: 3, kind: input, shape index: {}]
  %s4 = inlined_call_operand.hbm [shape: bf16[128,128], index: 4, kind: input, shape index: {}]
  %s5 = inlined_call_operand.hbm [shape: bf16[128,128], index: 5, kind: input, shape index: {}]
  %s6 = inlined_call_operand.vmem [shape: f32[1,128], index: 6, kind: input, shape index: {}]
  %s7 = inlined_call_operand.vmem [shape: f32[1,128], index: 7, kind: input, shape index: {}]
  %s8 = inlined_call_operand.vmem [shape: f32[1,128], index: 8, kind: input, shape index: {}]
  %s9 = inlined_call_operand.hbm [shape: bf16[4,64,64], index: 9, kind: input, shape index: {}]
  %s10 = inlined_call_operand.hbm [shape: bf16[128,128], index: 10, kind: input, shape index: {}]
  %s11 = inlined_call_operand.vmem [shape: f32[1,128], index: 11, kind: input, shape index: {}]
  %s12 = inlined_call_operand.hbm [shape: f32[2,64,128], index: 12, kind: output, shape index: {}]
  %s13 = sld [smem:[#allocation0]]
  $region123: #{tpu_custom_call.1} parent=0
    _
  %s15 = ssub.s32 1, %s13
  %s16 = scalar_select 0, %s15, %s13
  $region1: #{tpu_custom_call.1} parent=0
    #allocation2 [shape = 'u8[32768]{0}', space=vmem, size = 0x8000, scoped, tag = 'input window, operand 0']
    #allocation3 [shape = 's32[2]{0}', space=sflag, size = 0x8, scoped, tag = 'scoped memory for tpu_custom_call.1']
    #allocation4 [shape = 's32[2]{0}', space=sflag, size = 0x8, scoped, tag = 'scoped memory for tpu_custom_call.1']
    #allocation5 [shape = 'u8[32768]{0}', space=vmem, size = 0x8000, scoped, tag = 'input window, operand 1, single buffered']
    #allocation6 [shape = 's32[1]{0}', space=sflag, size = 0x4, scoped, tag = 'scoped memory for tpu_custom_call.1']
    #allocation7 [shape = 'u8[32768]{0}', space=vmem, size = 0x8000, scoped, tag = 'input window, operand 3, single buffered']
    #allocation8 [shape = 'u8[32768]{0}', space=vmem, size = 0x8000, scoped, tag = 'input window, operand 4, single buffered']
    #allocation9 [shape = 's32[1]{0}', space=sflag, size = 0x4, scoped, tag = 'scoped memory for tpu_custom_call.1']
    #allocation10 [shape = 'u8[32768]{0}', space=vmem, size = 0x8000, scoped, tag = 'input window, operand 5, single buffered']
    #allocation11 [shape = 'u8[65536]{0}', space=vmem, size = 0x10000, scoped, tag = 'input window, operand 9, single buffered']
    #allocation12 [shape = 's32[1]{0}', space=sflag, size = 0x4, scoped, tag = 'scoped memory for tpu_custom_call.1']
    #allocation13 [shape = 'u8[32768]{0}', space=vmem, size = 0x8000, scoped, tag = 'input window, operand 10, single buffered']
    #allocation14 [shape = 'u8[65536]{0}', space=vmem, size = 0x10000, scoped, tag = 'output window, operand 0']
    %17 = vsyncpa [#allocation3], 0
    %s18 = scalar_lea.sflag [#allocation3], 1
    %19 = vsyncpa %s18, 0
    %20 = vsyncpa [#allocation6], 0
    %21 = vsyncpa [#allocation9], 0
    %22 = vsyncpa [#allocation12], 0
    %23 = vsyncpa [#allocation4], 0
    %s24 = scalar_lea.sflag [#allocation4], 1
    %25 = vsyncpa %s24, 0
    loop: start=0, step=1, limit=4
    $region2: #{tpu_custom_call.1} parent=1 // loop_pre_header
      _
    $region3: #{tpu_custom_call.1} parent=1 // loop_header
      %s27 = sphi 0, %s31
      %p28 = scmp.ge.s32.totalorder %s27, 4
      %s37 = sphi 0, %s39
      %s40 = sphi 0, %s37
      %s41 = sphi 0, %s40
      %s57 = sphi 0, %s41
      %s61 = sphi 0, %s61
      %s63 = sphi 0, %s61
      %s64 = sphi 0, %s63
      %s78 = sphi 0, %s64
      %s82 = sphi 0, %s82
      %s84 = sphi 0, %s82
      %s85 = sphi 0, %s84
      %s99 = sphi 0, %s85
      %s103 = sphi 0, %s103
      %s105 = sphi 0, %s103
      %s106 = sphi 0, %s105
      %s120 = sphi 0, %s106
      %s124 = sphi 0, %s124
      %s126 = sphi 0, %s124
      %s127 = sphi 0, %s126
      %s141 = sphi 0, %s127
      %s145 = sphi 0, %s145
      %s147 = sphi 0, %s145
      %s148 = sphi 0, %s147
      %s162 = sphi 0, %s148
      %s166 = sphi 0, %s166
      %s168 = sphi 0, %s166
      %s169 = sphi 0, %s168
      %s183 = sphi 0, %s169
      %s187 = sphi 0, %s187
      %s189 = sphi 0, %s187
      %s190 = sphi 0, %s189
      %s204 = sphi 0, %s190
      %s208 = sphi 0, %s208
      %s210 = sphi 0, %s208
      %s211 = sphi 0, %s210
      %s225 = sphi 0, %s211
      %s229 = sphi 0, %s229
      %s231 = sphi 0, %s229
      %s232 = sphi 0, %s231
      %s246 = sphi 0, %s232
      %s250 = sphi 0, %s250
      %s252 = sphi 0, %s250
      %s253 = sphi 0, %s252
      %s267 = sphi 0, %s253
      %s271 = sphi 0, %s271
      %s273 = sphi 0, %s271
      %s274 = sphi 0, %s273
      %s288 = sphi 0, %s274
      %s294 = sphi 0, %s296
      %s297 = sphi 0, %s294
      %s298 = sphi 0, %s297
      %s314 = sphi 0, %s298
    $region4: #{tpu_custom_call.1} parent=1 // loop_header_branch
      %30 = sbr.rel (%p28) target = $region8
    $region5: #{tpu_custom_call.1} parent=1 // loop_body
      %s32 = ssub.s32 %s27, 1
      %s33 = ssub.s32 %s27, 2
      %s34 = sadd.s32 %s27, 1
      %s35 = ssub.s32 %s27, %s34
      %p36 = scmp.eq.s32.totalorder %s35, 0
      %s38 = sadd.s32 %s37, 1
      %s39 = scalar_select %p36, %s37, %s38
      %p42 = pneg %p36
      %p43 = scmp.eq.s32.totalorder %s27, 1
      %p44 = por %p42, %p43
      %p45 = scmp.ne.s32.totalorder %s37, %s40
      %p46 = scmp.eq.s32.totalorder %s27, 0
      %p47 = por %p45, %p46
      %p48 = scmp.ne.s32.totalorder %s37, %s40
      %p49 = scmp.eq.s32.totalorder %s32, 1
      %p50 = por %p48, %p49
      %p51 = scmp.ne.s32.totalorder %s40, %s41
      %p52 = scmp.eq.s32.totalorder %s32, 0
      %p53 = por %p51, %p52
      %p54 = scmp.ne.s32.totalorder %s40, %s41
      %p55 = scmp.eq.s32.totalorder %s33, 1
      %p56 = por %p54, %p55
      %p58 = scmp.ne.s32.totalorder %s41, %s57
      %p59 = scmp.eq.s32.totalorder %s33, 0
      %p60 = por %p58, %p59
      %s62 = sadd.s32 %s61, 1
      %p65 = scmp.eq.s32.totalorder %s27, 1
      %p66 = scmp.ne.s32.totalorder %s61, %s63
      %p67 = scmp.eq.s32.totalorder %s27, 0
      %p68 = por %p66, %p67
      %p69 = scmp.ne.s32.totalorder %s61, %s63
      %p70 = scmp.eq.s32.totalorder %s32, 1
      %p71 = por %p69, %p70
      %p72 = scmp.ne.s32.totalorder %s63, %s64
      %p73 = scmp.eq.s32.totalorder %s32, 0
      %p74 = por %p72, %p73
      %p75 = scmp.ne.s32.totalorder %s63, %s64
      %p76 = scmp.eq.s32.totalorder %s33, 1
      %p77 = por %p75, %p76
      %p79 = scmp.ne.s32.totalorder %s64, %s78
      %p80 = scmp.eq.s32.totalorder %s33, 0
      %p81 = por %p79, %p80
      %s83 = sadd.s32 %s82, 1
      %p86 = scmp.eq.s32.totalorder %s27, 1
      %p87 = scmp.ne.s32.totalorder %s82, %s84
      %p88 = scmp.eq.s32.totalorder %s27, 0
      %p89 = por %p87, %p88
      %p90 = scmp.ne.s32.totalorder %s82, %s84
      %p91 = scmp.eq.s32.totalorder %s32, 1
      %p92 = por %p90, %p91
      %p93 = scmp.ne.s32.totalorder %s84, %s85
      %p94 = scmp.eq.s32.totalorder %s32, 0
      %p95 = por %p93, %p94
      %p96 = scmp.ne.s32.totalorder %s84, %s85
      %p97 = scmp.eq.s32.totalorder %s33, 1
      %p98 = por %p96, %p97
      %p100 = scmp.ne.s32.totalorder %s85, %s99
      %p101 = scmp.eq.s32.totalorder %s33, 0
      %p102 = por %p100, %p101
      %s104 = sadd.s32 %s103, 1
      %p107 = scmp.eq.s32.totalorder %s27, 1
      %p108 = scmp.ne.s32.totalorder %s103, %s105
      %p109 = scmp.eq.s32.totalorder %s27, 0
      %p110 = por %p108, %p109
      %p111 = scmp.ne.s32.totalorder %s103, %s105
      %p112 = scmp.eq.s32.totalorder %s32, 1
      %p113 = por %p111, %p112
      %p114 = scmp.ne.s32.totalorder %s105, %s106
      %p115 = scmp.eq.s32.totalorder %s32, 0
      %p116 = por %p114, %p115
      %p117 = scmp.ne.s32.totalorder %s105, %s106
      %p118 = scmp.eq.s32.totalorder %s33, 1
      %p119 = por %p117, %p118
      %p121 = scmp.ne.s32.totalorder %s106, %s120
      %p122 = scmp.eq.s32.totalorder %s33, 0
      %p123 = por %p121, %p122
      %s125 = sadd.s32 %s124, 1
      %p128 = scmp.eq.s32.totalorder %s27, 1
      %p129 = scmp.ne.s32.totalorder %s124, %s126
      %p130 = scmp.eq.s32.totalorder %s27, 0
      %p131 = por %p129, %p130
      %p132 = scmp.ne.s32.totalorder %s124, %s126
      %p133 = scmp.eq.s32.totalorder %s32, 1
      %p134 = por %p132, %p133
      %p135 = scmp.ne.s32.totalorder %s126, %s127
      %p136 = scmp.eq.s32.totalorder %s32, 0
      %p137 = por %p135, %p136
      %p138 = scmp.ne.s32.totalorder %s126, %s127
      %p139 = scmp.eq.s32.totalorder %s33, 1
      %p140 = por %p138, %p139
      %p142 = scmp.ne.s32.totalorder %s127, %s141
      %p143 = scmp.eq.s32.totalorder %s33, 0
      %p144 = por %p142, %p143
      %s146 = sadd.s32 %s145, 1
      %p149 = scmp.eq.s32.totalorder %s27, 1
      %p150 = scmp.ne.s32.totalorder %s145, %s147
      %p151 = scmp.eq.s32.totalorder %s27, 0
      %p152 = por %p150, %p151
      %p153 = scmp.ne.s32.totalorder %s145, %s147
      %p154 = scmp.eq.s32.totalorder %s32, 1
      %p155 = por %p153, %p154
      %p156 = scmp.ne.s32.totalorder %s147, %s148
      %p157 = scmp.eq.s32.totalorder %s32, 0
      %p158 = por %p156, %p157
      %p159 = scmp.ne.s32.totalorder %s147, %s148
      %p160 = scmp.eq.s32.totalorder %s33, 1
      %p161 = por %p159, %p160
      %p163 = scmp.ne.s32.totalorder %s148, %s162
      %p164 = scmp.eq.s32.totalorder %s33, 0
      %p165 = por %p163, %p164
      %s167 = sadd.s32 %s166, 1
      %p170 = scmp.eq.s32.totalorder %s27, 1
      %p171 = scmp.ne.s32.totalorder %s166, %s168
      %p172 = scmp.eq.s32.totalorder %s27, 0
      %p173 = por %p171, %p172
      %p174 = scmp.ne.s32.totalorder %s166, %s168
      %p175 = scmp.eq.s32.totalorder %s32, 1
      %p176 = por %p174, %p175
      %p177 = scmp.ne.s32.totalorder %s168, %s169
      %p178 = scmp.eq.s32.totalorder %s32, 0
      %p179 = por %p177, %p178
      %p180 = scmp.ne.s32.totalorder %s168, %s169
      %p181 = scmp.eq.s32.totalorder %s33, 1
      %p182 = por %p180, %p181
      %p184 = scmp.ne.s32.totalorder %s169, %s183
      %p185 = scmp.eq.s32.totalorder %s33, 0
      %p186 = por %p184, %p185
      %s188 = sadd.s32 %s187, 1
      %p191 = scmp.eq.s32.totalorder %s27, 1
      %p192 = scmp.ne.s32.totalorder %s187, %s189
      %p193 = scmp.eq.s32.totalorder %s27, 0
      %p194 = por %p192, %p193
      %p195 = scmp.ne.s32.totalorder %s187, %s189
      %p196 = scmp.eq.s32.totalorder %s32, 1
      %p197 = por %p195, %p196
      %p198 = scmp.ne.s32.totalorder %s189, %s190
      %p199 = scmp.eq.s32.totalorder %s32, 0
      %p200 = por %p198, %p199
      %p201 = scmp.ne.s32.totalorder %s189, %s190
      %p202 = scmp.eq.s32.totalorder %s33, 1
      %p203 = por %p201, %p202
      %p205 = scmp.ne.s32.totalorder %s190, %s204
      %p206 = scmp.eq.s32.totalorder %s33, 0
      %p207 = por %p205, %p206
      %s209 = sadd.s32 %s208, 1
      %p212 = scmp.eq.s32.totalorder %s27, 1
      %p213 = scmp.ne.s32.totalorder %s208, %s210
      %p214 = scmp.eq.s32.totalorder %s27, 0
      %p215 = por %p213, %p214
      %p216 = scmp.ne.s32.totalorder %s208, %s210
      %p217 = scmp.eq.s32.totalorder %s32, 1
      %p218 = por %p216, %p217
      %p219 = scmp.ne.s32.totalorder %s210, %s211
      %p220 = scmp.eq.s32.totalorder %s32, 0
      %p221 = por %p219, %p220
      %p222 = scmp.ne.s32.totalorder %s210, %s211
      %p223 = scmp.eq.s32.totalorder %s33, 1
      %p224 = por %p222, %p223
      %p226 = scmp.ne.s32.totalorder %s211, %s225
      %p227 = scmp.eq.s32.totalorder %s33, 0
      %p228 = por %p226, %p227
      %s230 = sadd.s32 %s229, 1
      %p233 = scmp.eq.s32.totalorder %s27, 1
      %p234 = scmp.ne.s32.totalorder %s229, %s231
      %p235 = scmp.eq.s32.totalorder %s27, 0
      %p236 = por %p234, %p235
      %p237 = scmp.ne.s32.totalorder %s229, %s231
      %p238 = scmp.eq.s32.totalorder %s32, 1
      %p239 = por %p237, %p238
      %p240 = scmp.ne.s32.totalorder %s231, %s232
      %p241 = scmp.eq.s32.totalorder %s32, 0
      %p242 = por %p240, %p241
      %p243 = scmp.ne.s32.totalorder %s231, %s232
      %p244 = scmp.eq.s32.totalorder %s33, 1
      %p245 = por %p243, %p244
      %p247 = scmp.ne.s32.totalorder %s232, %s246
      %p248 = scmp.eq.s32.totalorder %s33, 0
      %p249 = por %p247, %p248
      %s251 = sadd.s32 %s250, 1
      %p254 = scmp.eq.s32.totalorder %s27, 1
      %p255 = scmp.ne.s32.totalorder %s250, %s252
      %p256 = scmp.eq.s32.totalorder %s27, 0
      %p257 = por %p255, %p256
      %p258 = scmp.ne.s32.totalorder %s250, %s252
      %p259 = scmp.eq.s32.totalorder %s32, 1
      %p260 = por %p258, %p259
      %p261 = scmp.ne.s32.totalorder %s252, %s253
      %p262 = scmp.eq.s32.totalorder %s32, 0
      %p263 = por %p261, %p262
      %p264 = scmp.ne.s32.totalorder %s252, %s253
      %p265 = scmp.eq.s32.totalorder %s33, 1
      %p266 = por %p264, %p265
      %p268 = scmp.ne.s32.totalorder %s253, %s267
      %p269 = scmp.eq.s32.totalorder %s33, 0
      %p270 = por %p268, %p269
      %s272 = sadd.s32 %s271, 1
      %p275 = scmp.eq.s32.totalorder %s27, 1
      %p276 = scmp.ne.s32.totalorder %s271, %s273
      %p277 = scmp.eq.s32.totalorder %s27, 0
      %p278 = por %p276, %p277
      %p279 = scmp.ne.s32.totalorder %s271, %s273
      %p280 = scmp.eq.s32.totalorder %s32, 1
      %p281 = por %p279, %p280
      %p282 = scmp.ne.s32.totalorder %s273, %s274
      %p283 = scmp.eq.s32.totalorder %s32, 0
      %p284 = por %p282, %p283
      %p285 = scmp.ne.s32.totalorder %s273, %s274
      %p286 = scmp.eq.s32.totalorder %s33, 1
      %p287 = por %p285, %p286
      %p289 = scmp.ne.s32.totalorder %s274, %s288
      %p290 = scmp.eq.s32.totalorder %s33, 0
      %p291 = por %p289, %p290
      %s292 = ssub.s32 %s27, %s34
      %p293 = scmp.eq.s32.totalorder %s292, 0
      %s295 = sadd.s32 %s294, 1
      %s296 = scalar_select %p293, %s294, %s295
      %p299 = pneg %p293
      %p300 = scmp.eq.s32.totalorder %s27, 1
      %p301 = por %p299, %p300
      %p302 = scmp.ne.s32.totalorder %s294, %s297
      %p303 = scmp.eq.s32.totalorder %s27, 0
      %p304 = por %p302, %p303
      %p305 = scmp.ne.s32.totalorder %s294, %s297
      %p306 = scmp.eq.s32.totalorder %s32, 1
      %p307 = por %p305, %p306
      %p308 = scmp.ne.s32.totalorder %s297, %s298
      %p309 = scmp.eq.s32.totalorder %s32, 0
      %p310 = por %p308, %p309
      %p311 = scmp.ne.s32.totalorder %s297, %s298
      %p312 = scmp.eq.s32.totalorder %s33, 1
      %p313 = por %p311, %p312
      %p315 = scmp.ne.s32.totalorder %s298, %s314
      %p316 = scmp.eq.s32.totalorder %s33, 0
      %p317 = por %p315, %p316
      %p318 = scmp.le.s32.totalorder 1, %s27
      %p319 = scmp.lt.s32.totalorder %s27, 3
      %p320 = pnand %p318, %p319
      %p321 = pneg %p320
      // Predicated region
      $region9: #{tpu_custom_call.1} parent=5 // pred_check
        _
      $region10: #{tpu_custom_call.1} parent=5 // pred_check_branch
        %323 = sbr.rel (%p320) target = $region12
      $region11: #{tpu_custom_call.1} parent=5 // pred_region
        %s324 = ssub.s32 %s27, 1
        // Predicated region
        $region13: #{tpu_custom_call.1} parent=11 // pred_check
          %p325 = pneg %p74
        $region14: #{tpu_custom_call.1} parent=11 // pred_check_branch
          %327 = sbr.rel (%p325) target = $region16
        $region15: #{tpu_custom_call.1} parent=11 // pred_region
          %s329 = ssub.s32 1024, 1024
          %330 = vsyncadd [#allocation6], %s329
          %s331 = sshll.u32 [#allocation5], 4
          %s332 = int_to_ptr.vmem [resolvable:$true] %s331
          %337 = dma.hbm_to_vmem [thread:$0]  %s1, 1024, %s332, [#allocation6], 64, 64, 4
        $region16: #{tpu_custom_call.1} parent=11 // pred_fallthru
          _
        // Predicated region
        $region17: #{tpu_custom_call.1} parent=11 // pred_check
          %p338 = pneg %p95
        $region18: #{tpu_custom_call.1} parent=11 // pred_check_branch
          %340 = sbr.rel (%p338) target = $region20
        $region19: #{tpu_custom_call.1} parent=11 // pred_region
          _
        $region20: #{tpu_custom_call.1} parent=11 // pred_fallthru
          _
        // Predicated region
        $region21: #{tpu_custom_call.1} parent=11 // pred_check
          %p341 = pneg %p116
        $region22: #{tpu_custom_call.1} parent=11 // pred_check_branch
          %343 = sbr.rel (%p341) target = $region24
        $region23: #{tpu_custom_call.1} parent=11 // pred_region
          %s345 = ssub.s32 1024, 1024
          %346 = vsyncadd [#allocation6], %s345
          %s347 = sshll.u32 [#allocation7], 4
          %s348 = int_to_ptr.vmem [resolvable:$true] %s347
          %353 = dma.hbm_to_vmem [thread:$0]  %s3, 1024, %s348, [#allocation6], 64, 64, 4
        $region24: #{tpu_custom_call.1} parent=11 // pred_fallthru
          _
        // Predicated region
        $region25: #{tpu_custom_call.1} parent=11 // pred_check
          %p354 = pneg %p137
        $region26: #{tpu_custom_call.1} parent=11 // pred_check_branch
          %356 = sbr.rel (%p354) target = $region28
        $region27: #{tpu_custom_call.1} parent=11 // pred_region
          %s358 = ssub.s32 1024, 1024
          %359 = vsyncadd [#allocation9], %s358
          %s360 = sshll.u32 [#allocation8], 4
          %s361 = int_to_ptr.vmem [resolvable:$true] %s360
          %366 = dma.hbm_to_vmem [thread:$0]  %s4, 1024, %s361, [#allocation9], 64, 64, 4
        $region28: #{tpu_custom_call.1} parent=11 // pred_fallthru
          _
        // Predicated region
        $region29: #{tpu_custom_call.1} parent=11 // pred_check
          %p367 = pneg %p158
        $region30: #{tpu_custom_call.1} parent=11 // pred_check_branch
          %369 = sbr.rel (%p367) target = $region32
        $region31: #{tpu_custom_call.1} parent=11 // pred_region
          %s371 = ssub.s32 1024, 1024
          %372 = vsyncadd [#allocation9], %s371
          %s373 = sshll.u32 [#allocation10], 4
          %s374 = int_to_ptr.vmem [resolvable:$true] %s373
          %379 = dma.hbm_to_vmem [thread:$0]  %s5, 1024, %s374, [#allocation9], 64, 64, 4
        $region32: #{tpu_custom_call.1} parent=11 // pred_fallthru
          _
        // Predicated region
        $region33: #{tpu_custom_call.1} parent=11 // pred_check
          %p380 = pneg %p179
        $region34: #{tpu_custom_call.1} parent=11 // pred_check_branch
          %382 = sbr.rel (%p380) target = $region36
        $region35: #{tpu_custom_call.1} parent=11 // pred_region
          _
        $region36: #{tpu_custom_call.1} parent=11 // pred_fallthru
          _
        // Predicated region
        $region37: #{tpu_custom_call.1} parent=11 // pred_check
          %p383 = pneg %p200
        $region38: #{tpu_custom_call.1} parent=11 // pred_check_branch
          %385 = sbr.rel (%p383) target = $region40
        $region39: #{tpu_custom_call.1} parent=11 // pred_region
          _
        $region40: #{tpu_custom_call.1} parent=11 // pred_fallthru
          _
        // Predicated region
        $region41: #{tpu_custom_call.1} parent=11 // pred_check
          %p386 = pneg %p221
        $region42: #{tpu_custom_call.1} parent=11 // pred_check_branch
          %388 = sbr.rel (%p386) target = $region44
        $region43: #{tpu_custom_call.1} parent=11 // pred_region
          _
        $region44: #{tpu_custom_call.1} parent=11 // pred_fallthru
          _
        // Predicated region
        $region45: #{tpu_custom_call.1} parent=11 // pred_check
          %p389 = pneg %p242
        $region46: #{tpu_custom_call.1} parent=11 // pred_check_branch
          %391 = sbr.rel (%p389) target = $region48
        $region47: #{tpu_custom_call.1} parent=11 // pred_region
          %s393 = ssub.s32 2048, 2048
          %394 = vsyncadd [#allocation12], %s393
          %s395 = sshll.u32 [#allocation11], 4
          %s396 = int_to_ptr.vmem [resolvable:$true] %s395
          %401 = dma.hbm_to_vmem [thread:$0]  %s9, 2048, %s396, [#allocation12], 64, 64, 4
        $region48: #{tpu_custom_call.1} parent=11 // pred_fallthru
          _
        // Predicated region
        $region49: #{tpu_custom_call.1} parent=11 // pred_check
          %p402 = pneg %p263
        $region50: #{tpu_custom_call.1} parent=11 // pred_check_branch
          %404 = sbr.rel (%p402) target = $region52
        $region51: #{tpu_custom_call.1} parent=11 // pred_region
          %s406 = ssub.s32 1024, 1024
          %407 = vsyncadd [#allocation12], %s406
          %s408 = sshll.u32 [#allocation13], 4
          %s409 = int_to_ptr.vmem [resolvable:$true] %s408
          %414 = dma.hbm_to_vmem [thread:$0]  %s10, 1024, %s409, [#allocation12], 64, 64, 4
        $region52: #{tpu_custom_call.1} parent=11 // pred_fallthru
          _
        // Predicated region
        $region53: #{tpu_custom_call.1} parent=11 // pred_check
          %p415 = pneg %p284
        $region54: #{tpu_custom_call.1} parent=11 // pred_check_branch
          %417 = sbr.rel (%p415) target = $region56
        $region55: #{tpu_custom_call.1} parent=11 // pred_region
          _
        $region56: #{tpu_custom_call.1} parent=11 // pred_fallthru
          _
      $region12: #{tpu_custom_call.1} parent=5 // pred_fallthru
        _
      %p418 = scmp.lt.s32.totalorder %s27, 2
      // Predicated region
      $region57: #{tpu_custom_call.1} parent=5 // pred_check
        %p419 = pneg %p418
      $region58: #{tpu_custom_call.1} parent=5 // pred_check_branch
        %421 = sbr.rel (%p419) target = $region60
      $region59: #{tpu_custom_call.1} parent=5 // pred_region
        // Predicated region
        $region61: #{tpu_custom_call.1} parent=59 // pred_check
          %p422 = pneg %p47
        $region62: #{tpu_custom_call.1} parent=59 // pred_check_branch
          %424 = sbr.rel (%p422) target = $region64
        $region63: #{tpu_custom_call.1} parent=59 // pred_region
          %s425 = sand.u32 %s37, 1
          %s426 = scalar_lea.sflag [#allocation3], %s425
          %s427 = sand.u32 %s37, 1
          %s428 = smul.addr %s427, 32
          %s429 = scalar_lea.vmem [#allocation2], %s428
          %s431 = ssub.s32 512, 512
          %432 = vsyncadd %s426, %s431
          %s433 = smul.addr %s27, 8
          %s434 = smul.addr %s433, 64
          %s435 = scalar_lea.hbm %s0, %s434
          %s436 = sshll.u32 %s429, 4
          %s437 = int_to_ptr.vmem [resolvable:$true] %s436
          %442 = dma.hbm_to_vmem [thread:$0]  %s435, 512, %s437, %s426, 64, 64, 4
        $region64: #{tpu_custom_call.1} parent=59 // pred_fallthru
          _
      $region60: #{tpu_custom_call.1} parent=5 // pred_fallthru
        _
      %p443 = scmp.le.s32.totalorder 1, %s27
      %p444 = scmp.lt.s32.totalorder %s27, 3
      %p445 = pnand %p443, %p444
      %p446 = pneg %p445
      // Predicated region
      $region65: #{tpu_custom_call.1} parent=5 // pred_check
        _
      $region66: #{tpu_custom_call.1} parent=5 // pred_check_branch
        %448 = sbr.rel (%p445) target = $region68
      $region67: #{tpu_custom_call.1} parent=5 // pred_region
        %s449 = ssub.s32 %s27, 1
        %s450 = sand.u32 %s40, 1
        %s451 = scalar_lea.sflag [#allocation3], %s450
        %s452 = sand.u32 %s40, 1
        %s453 = smul.addr %s452, 32
        %s454 = scalar_lea.vmem [#allocation2], %s453
        // Predicated region
        $region69: #{tpu_custom_call.1} parent=67 // pred_check
          %p455 = pneg %p53
        $region70: #{tpu_custom_call.1} parent=67 // pred_check_branch
          %457 = sbr.rel (%p455) target = $region72
        $region71: #{tpu_custom_call.1} parent=67 // pred_region
          %458 = dma.done %s451, 512
        $region72: #{tpu_custom_call.1} parent=67 // pred_fallthru
          _
        // Predicated region
        $region73: #{tpu_custom_call.1} parent=67 // pred_check
          %p459 = pneg %p74
        $region74: #{tpu_custom_call.1} parent=67 // pred_check_branch
          %461 = sbr.rel (%p459) target = $region76
        $region75: #{tpu_custom_call.1} parent=67 // pred_region
          %462 = dma.done [#allocation6], 1024
        $region76: #{tpu_custom_call.1} parent=67 // pred_fallthru
          _
        // Predicated region
        $region77: #{tpu_custom_call.1} parent=67 // pred_check
          %p463 = pneg %p116
        $region78: #{tpu_custom_call.1} parent=67 // pred_check_branch
          %465 = sbr.rel (%p463) target = $region80
        $region79: #{tpu_custom_call.1} parent=67 // pred_region
          %466 = dma.done [#allocation6], 1024
        $region80: #{tpu_custom_call.1} parent=67 // pred_fallthru
          _
        // Predicated region
        $region81: #{tpu_custom_call.1} parent=67 // pred_check
          %p467 = pneg %p137
        $region82: #{tpu_custom_call.1} parent=67 // pred_check_branch
          %469 = sbr.rel (%p467) target = $region84
        $region83: #{tpu_custom_call.1} parent=67 // pred_region
          %470 = dma.done [#allocation9], 1024
        $region84: #{tpu_custom_call.1} parent=67 // pred_fallthru
          _
        // Predicated region
        $region85: #{tpu_custom_call.1} parent=67 // pred_check
          %p471 = pneg %p158
        $region86: #{tpu_custom_call.1} parent=67 // pred_check_branch
          %473 = sbr.rel (%p471) target = $region88
        $region87: #{tpu_custom_call.1} parent=67 // pred_region
          %474 = dma.done [#allocation9], 1024
        $region88: #{tpu_custom_call.1} parent=67 // pred_fallthru
          _
        // Predicated region
        $region89: #{tpu_custom_call.1} parent=67 // pred_check
          %p475 = pneg %p242
        $region90: #{tpu_custom_call.1} parent=67 // pred_check_branch
          %477 = sbr.rel (%p475) target = $region92
        $region91: #{tpu_custom_call.1} parent=67 // pred_region
          %478 = dma.done [#allocation12], 2048
        $region92: #{tpu_custom_call.1} parent=67 // pred_fallthru
          _
        // Predicated region
        $region93: #{tpu_custom_call.1} parent=67 // pred_check
          %p479 = pneg %p263
        $region94: #{tpu_custom_call.1} parent=67 // pred_check_branch
          %481 = sbr.rel (%p479) target = $region96
        $region95: #{tpu_custom_call.1} parent=67 // pred_region
          %482 = dma.done [#allocation12], 1024
        $region96: #{tpu_custom_call.1} parent=67 // pred_fallthru
          _
        %s483 = sand.u32 %s40, 1
        %s484 = scalar_lea.sflag [#allocation3], %s483
        %s485 = sand.u32 %s40, 1
        %s486 = smul.addr %s485, 32
        %s487 = scalar_lea.vmem [#allocation2], %s486
        %p488 = pneg %p53
        %p489 = pneg %p50
        %p490 = pneg %p74
        %p491 = pneg %p71
        %p492 = pneg %p95
        %p493 = pneg %p92
        %p494 = pneg %p116
        %p495 = pneg %p113
        %p496 = pneg %p137
        %p497 = pneg %p134
        %p498 = pneg %p158
        %p499 = pneg %p155
        %p500 = pneg %p179
        %p501 = pneg %p176
        %p502 = pneg %p200
        %p503 = pneg %p197
        %p504 = pneg %p221
        %p505 = pneg %p218
        %p506 = pneg %p242
        %p507 = pneg %p239
        %p508 = pneg %p263
        %p509 = pneg %p260
        %p510 = pneg %p284
        %p511 = pneg %p281
        %p512 = pneg %p310
        %p513 = pneg %p307
        %s514 = sand.u32 %s297, 1
        %s515 = scalar_lea.sflag [#allocation4], %s514
        %s516 = sand.u32 %s297, 1
        %s517 = smul.addr %s516, 64
        %s518 = scalar_lea.vmem [#allocation14], %s517
        %v522 = vld [vmem:[%s454] sm:$0xf]
        %v523 = vld [vmem:[%s454 + $0x4] sm:$0xf]
        %v524 = vld [vmem:[%s454 + $0x8] sm:$0xf]
        %v525 = vld [vmem:[%s454 + $0xc] sm:$0xf]
        %v526 = vld [vmem:[%s454 + $0x10] sm:$0xf]
        %v527 = vld [vmem:[%s454 + $0x14] sm:$0xf]
        %v528 = vld [vmem:[%s454 + $0x18] sm:$0xf]
        %v529 = vld [vmem:[%s454 + $0x1c] sm:$0xf]
        %v530 = vld [vmem:[#allocation5] sm:$0xf]
        %v531 = vld [vmem:[#allocation5 + $0x4] sm:$0xf]
        %v532 = vld [vmem:[#allocation5 + $0x8] sm:$0xf]
        %v533 = vld [vmem:[#allocation5 + $0xc] sm:$0xf]
        %v534 = vld [vmem:[#allocation5 + $0x10] sm:$0xf]
        %v535 = vld [vmem:[#allocation5 + $0x14] sm:$0xf]
        %v536 = vld [vmem:[#allocation5 + $0x18] sm:$0xf]
        %v537 = vld [vmem:[#allocation5 + $0x1c] sm:$0xf]
        %v538 = vld [vmem:[#allocation5 + $0x20] sm:$0xf]
        %v539 = vld [vmem:[#allocation5 + $0x24] sm:$0xf]
        %v540 = vld [vmem:[#allocation5 + $0x28] sm:$0xf]
        %v541 = vld [vmem:[#allocation5 + $0x2c] sm:$0xf]
        %v542 = vld [vmem:[#allocation5 + $0x30] sm:$0xf]
        %v543 = vld [vmem:[#allocation5 + $0x34] sm:$0xf]
        %v544 = vld [vmem:[#allocation5 + $0x38] sm:$0xf]
        %v545 = vld [vmem:[#allocation5 + $0x3c] sm:$0xf]
        %v546 = vld [vmem:[%s2] sm:$0x1]
        %v548 = vlaneseq
        %v549 = vshrl.u32 %v548, 7
        %v550 = vsub.s32 0, %v549
        %v551 = vrot.slane %v546, %v550
        %v561 = vunpack.c.l.b16 %v522
        %v562 = vunpack.c.l.b16 %v523
        %v563 = vunpack.c.l.b16 %v524
        %v564 = vunpack.c.l.b16 %v525
        %v565 = vunpack.c.l.b16 %v526
        %v566 = vunpack.c.l.b16 %v527
        %v567 = vunpack.c.l.b16 %v528
        %v568 = vunpack.c.l.b16 %v529
        %v569 = vpack.c.b16 %v562, %v561
        %v570 = vpack.c.b16 %v564, %v563
        %v571 = vpack.c.b16 %v566, %v565
        %v572 = vpack.c.b16 %v568, %v567
        %v593 = vunpack.c.l.b16 %v530
        %v594 = vunpack.c.l.b16 %v531
        %v595 = vunpack.c.l.b16 %v532
        %v596 = vunpack.c.l.b16 %v533
        %v597 = vunpack.c.l.b16 %v534
        %v598 = vunpack.c.l.b16 %v535
        %v599 = vunpack.c.l.b16 %v536
        %v600 = vunpack.c.l.b16 %v537
        %v601 = vunpack.c.l.b16 %v538
        %v602 = vunpack.c.l.b16 %v539
        %v603 = vunpack.c.l.b16 %v540
        %v604 = vunpack.c.l.b16 %v541
        %v605 = vunpack.c.l.b16 %v542
        %v606 = vunpack.c.l.b16 %v543
        %v607 = vunpack.c.l.b16 %v544
        %v608 = vunpack.c.l.b16 %v545
        %v609 = vpack.c.b16 %v594, %v593
        %v610 = vpack.c.b16 %v596, %v595
        %v611 = vpack.c.b16 %v598, %v597
        %v612 = vpack.c.b16 %v600, %v599
        %v613 = vpack.c.b16 %v602, %v601
        %v614 = vpack.c.b16 %v604, %v603
        %v615 = vpack.c.b16 %v606, %v605
        %v616 = vpack.c.b16 %v608, %v607
        %625 = vmatprep.subr.bf16.mxu0 0
        %626 = vmatpush1.bf16.msra.mxu0 %v609
        %627 = vmatprep.subr.bf16.mxu0 0
        %628 = vmatpush1.bf16.msra.mxu0 %v610
        %629 = vmatprep.subr.bf16.mxu0 0
        %630 = vmatpush1.bf16.msra.mxu0 %v611
        %631 = vmatprep.subr.bf16.mxu0 0
        %632 = vmatpush1.bf16.msra.mxu0 %v612
        %633 = vmatprep.subr.bf16.mxu0 0
        %634 = vmatpush1.bf16.msra.mxu0 %v613
        %635 = vmatprep.subr.bf16.mxu0 0
        %636 = vmatpush1.bf16.msra.mxu0 %v614
        %637 = vmatprep.subr.bf16.mxu0 0
        %638 = vmatpush1.bf16.msra.mxu0 %v615
        %639 = vmatprep.subr.bf16.mxu0 0
        %640 = vmatpush1.bf16.msra.mxu0 %v616
        %641 = vmatprep.subr.bf16.mxu0 0
        %642 = vmatpush1.bf16.msra.mxu0 0
        %643 = vmatprep.subr.bf16.mxu0 0
        %644 = vmatpush1.bf16.msra.mxu0 0
        %645 = vmatprep.subr.bf16.mxu0 0
        %646 = vmatpush1.bf16.msra.mxu0 0
        %647 = vmatprep.subr.bf16.mxu0 0
        %648 = vmatpush1.bf16.msra.mxu0 0
        %649 = vmatprep.subr.bf16.mxu0 0
        %650 = vmatpush1.bf16.msra.mxu0 0
        %651 = vmatprep.subr.bf16.mxu0 0
        %652 = vmatpush1.bf16.msra.mxu0 0
        %653 = vmatprep.subr.bf16.mxu0 0
        %654 = vmatpush1.bf16.msra.mxu0 0
        %655 = vmatprep.subr.bf16.mxu0 0
        %656 = vmatpush1.bf16.msra.mxu0 0
        %657 = vmatprep.mubr.bf16.mxu0 0
        %658 = vmatmul.mubr.bf16.gmra.mrb[0].mxu0 %v569
        %v659 = vpop.f32.mrb[0].mxu0
        %v660 = vadd.f32 %v551, %v659
        %v661 = vpop.f32.mrb[0].mxu0
        %v662 = vpop.f32.mrb[0].mxu0
        %v663 = vadd.f32 %v551, %v662
        %v664 = vpop.f32.mrb[0].mxu0
        %665 = vmatprep.mubr.bf16.mxu0 0
        %666 = vmatmul.mubr.bf16.gmra.mrb[0].mxu0 %v570
        %v667 = vpop.f32.mrb[0].mxu0
        %v668 = vadd.f32 %v551, %v667
        %v669 = vpop.f32.mrb[0].mxu0
        %v670 = vpop.f32.mrb[0].mxu0
        %v671 = vadd.f32 %v551, %v670
        %v672 = vpop.f32.mrb[0].mxu0
        %673 = vmatprep.mubr.bf16.mxu0 0
        %674 = vmatmul.mubr.bf16.gmra.mrb[0].mxu0 %v571
        %v675 = vpop.f32.mrb[0].mxu0
        %v676 = vadd.f32 %v551, %v675
        %v677 = vpop.f32.mrb[0].mxu0
        %v678 = vpop.f32.mrb[0].mxu0
        %v679 = vadd.f32 %v551, %v678
        %v680 = vpop.f32.mrb[0].mxu0
        %681 = vmatprep.mubr.bf16.mxu0 0
        %682 = vmatmul.mubr.bf16.gmra.mrb[0].mxu0 %v572
        %v683 = vpop.f32.mrb[0].mxu0
        %v684 = vadd.f32 %v551, %v683
        %v685 = vpop.f32.mrb[0].mxu0
        %v686 = vpop.f32.mrb[0].mxu0
        %v687 = vadd.f32 %v551, %v686
        %v688 = vpop.f32.mrb[0].mxu0
        %689 = vdwg.mxu0
        %v690 = vmax.f32 %v660, 0.0
        %v691 = vmax.f32 %v663, 0.0
        %v692 = vmax.f32 %v668, 0.0
        %v693 = vmax.f32 %v671, 0.0
        %v694 = vmax.f32 %v676, 0.0
        %v695 = vmax.f32 %v679, 0.0
        %v696 = vmax.f32 %v684, 0.0
        %v697 = vmax.f32 %v687, 0.0
        %v698 = vlaneseq
        %v699 = vand.u32 %v698, 127
        %v700 = vpack.c.bf16 %v691, %v690
        %v701 = vpack.c.bf16 %v693, %v692
        %v702 = vpack.c.bf16 %v695, %v694
        %v703 = vpack.c.bf16 %v697, %v696
        %v704 = vld [vmem:[#allocation7] sm:$0xf]
        %v705 = vld [vmem:[#allocation7 + $0x4] sm:$0xf]
        %v706 = vld [vmem:[#allocation7 + $0x8] sm:$0xf]
        %v707 = vld [vmem:[#allocation7 + $0xc] sm:$0xf]
        %v708 = vld [vmem:[#allocation7 + $0x10] sm:$0xf]
        %v709 = vld [vmem:[#allocation7 + $0x14] sm:$0xf]
        %v710 = vld [vmem:[#allocation7 + $0x18] sm:$0xf]
        %v711 = vld [vmem:[#allocation7 + $0x1c] sm:$0xf]
        %v712 = vld [vmem:[#allocation7 + $0x20] sm:$0xf]
        %v713 = vld [vmem:[#allocation7 + $0x24] sm:$0xf]
        %v714 = vld [vmem:[#allocation7 + $0x28] sm:$0xf]
        %v715 = vld [vmem:[#allocation7 + $0x2c] sm:$0xf]
        %v716 = vld [vmem:[#allocation7 + $0x30] sm:$0xf]
        %v717 = vld [vmem:[#allocation7 + $0x34] sm:$0xf]
        %v718 = vld [vmem:[#allocation7 + $0x38] sm:$0xf]
        %v719 = vld [vmem:[#allocation7 + $0x3c] sm:$0xf]
        %v720 = vld [vmem:[%s6] sm:$0x1]
        %v722 = vlaneseq
        %v723 = vshrl.u32 %v722, 7
        %v724 = vsub.s32 0, %v723
        %v725 = vrot.slane %v720, %v724
        %v743 = vunpack.c.l.b16 %v704
        %v744 = vunpack.c.l.b16 %v705
        %v745 = vunpack.c.l.b16 %v706
        %v746 = vunpack.c.l.b16 %v707
        %v747 = vunpack.c.l.b16 %v708
        %v748 = vunpack.c.l.b16 %v709
        %v749 = vunpack.c.l.b16 %v710
        %v750 = vunpack.c.l.b16 %v711
        %v751 = vunpack.c.l.b16 %v712
        %v752 = vunpack.c.l.b16 %v713
        %v753 = vunpack.c.l.b16 %v714
        %v754 = vunpack.c.l.b16 %v715
        %v755 = vunpack.c.l.b16 %v716
        %v756 = vunpack.c.l.b16 %v717
        %v757 = vunpack.c.l.b16 %v718
        %v758 = vunpack.c.l.b16 %v719
        %v759 = vpack.c.b16 %v744, %v743
        %v760 = vpack.c.b16 %v746, %v745
        %v761 = vpack.c.b16 %v748, %v747
        %v762 = vpack.c.b16 %v750, %v749
        %v763 = vpack.c.b16 %v752, %v751
        %v764 = vpack.c.b16 %v754, %v753
        %v765 = vpack.c.b16 %v756, %v755
        %v766 = vpack.c.b16 %v758, %v757
        %775 = vmatprep.subr.bf16.mxu0 0
        %776 = vmatpush1.bf16.msra.mxu0 %v759
        %777 = vmatprep.subr.bf16.mxu0 0
        %778 = vmatpush1.bf16.msra.mxu0 %v760
        %779 = vmatprep.subr.bf16.mxu0 0
        %780 = vmatpush1.bf16.msra.mxu0 %v761
        %781 = vmatprep.subr.bf16.mxu0 0
        %782 = vmatpush1.bf16.msra.mxu0 %v762
        %783 = vmatprep.subr.bf16.mxu0 0
        %784 = vmatpush1.bf16.msra.mxu0 %v763
        %785 = vmatprep.subr.bf16.mxu0 0
        %786 = vmatpush1.bf16.msra.mxu0 %v764
        %787 = vmatprep.subr.bf16.mxu0 0
        %788 = vmatpush1.bf16.msra.mxu0 %v765
        %789 = vmatprep.subr.bf16.mxu0 0
        %790 = vmatpush1.bf16.msra.mxu0 %v766
        %791 = vmatprep.subr.bf16.mxu0 0
        %792 = vmatpush1.bf16.msra.mxu0 0
        %793 = vmatprep.subr.bf16.mxu0 0
        %794 = vmatpush1.bf16.msra.mxu0 0
        %795 = vmatprep.subr.bf16.mxu0 0
        %796 = vmatpush1.bf16.msra.mxu0 0
        %797 = vmatprep.subr.bf16.mxu0 0
        %798 = vmatpush1.bf16.msra.mxu0 0
        %799 = vmatprep.subr.bf16.mxu0 0
        %800 = vmatpush1.bf16.msra.mxu0 0
        %801 = vmatprep.subr.bf16.mxu0 0
        %802 = vmatpush1.bf16.msra.mxu0 0
        %803 = vmatprep.subr.bf16.mxu0 0
        %804 = vmatpush1.bf16.msra.mxu0 0
        %805 = vmatprep.subr.bf16.mxu0 0
        %806 = vmatpush1.bf16.msra.mxu0 0
        %807 = vmatprep.mubr.bf16.mxu0 0
        %808 = vmatmul.mubr.bf16.gmra.mrb[0].mxu0 %v700
        %v809 = vpop.f32.mrb[0].mxu0
        %v810 = vadd.f32 %v725, %v809
        %v811 = vpop.f32.mrb[0].mxu0
        %v812 = vpop.f32.mrb[0].mxu0
        %v813 = vadd.f32 %v725, %v812
        %v814 = vpop.f32.mrb[0].mxu0
        %815 = vmatprep.mubr.bf16.mxu0 0
        %816 = vmatmul.mubr.bf16.gmra.mrb[0].mxu0 %v701
        %v817 = vpop.f32.mrb[0].mxu0
        %v818 = vadd.f32 %v725, %v817
        %v819 = vpop.f32.mrb[0].mxu0
        %v820 = vpop.f32.mrb[0].mxu0
        %v821 = vadd.f32 %v725, %v820
        %v822 = vpop.f32.mrb[0].mxu0
        %823 = vmatprep.mubr.bf16.mxu0 0
        %824 = vmatmul.mubr.bf16.gmra.mrb[0].mxu0 %v702
        %v825 = vpop.f32.mrb[0].mxu0
        %v826 = vadd.f32 %v725, %v825
        %v827 = vpop.f32.mrb[0].mxu0
        %v828 = vpop.f32.mrb[0].mxu0
        %v829 = vadd.f32 %v725, %v828
        %v830 = vpop.f32.mrb[0].mxu0
        %831 = vmatprep.mubr.bf16.mxu0 0
        %832 = vmatmul.mubr.bf16.gmra.mrb[0].mxu0 %v703
        %v833 = vpop.f32.mrb[0].mxu0
        %v834 = vadd.f32 %v725, %v833
        %v835 = vpop.f32.mrb[0].mxu0
        %v836 = vpop.f32.mrb[0].mxu0
        %v837 = vadd.f32 %v725, %v836
        %v838 = vpop.f32.mrb[0].mxu0
        %839 = vdwg.mxu0
        %v840 = vpack.c.bf16 %v813, %v810
        %v841 = vpack.c.bf16 %v821, %v818
        %v842 = vpack.c.bf16 %v829, %v826
        %v843 = vpack.c.bf16 %v837, %v834
        %v844 = vld [vmem:[#allocation8] sm:$0xf]
        %v845 = vld [vmem:[#allocation8 + $0x4] sm:$0xf]
        %v846 = vld [vmem:[#allocation8 + $0x8] sm:$0xf]
        %v847 = vld [vmem:[#allocation8 + $0xc] sm:$0xf]
        %v848 = vld [vmem:[#allocation8 + $0x10] sm:$0xf]
        %v849 = vld [vmem:[#allocation8 + $0x14] sm:$0xf]
        %v850 = vld [vmem:[#allocation8 + $0x18] sm:$0xf]
        %v851 = vld [vmem:[#allocation8 + $0x1c] sm:$0xf]
        %v852 = vld [vmem:[#allocation8 + $0x20] sm:$0xf]
        %v853 = vld [vmem:[#allocation8 + $0x24] sm:$0xf]
        %v854 = vld [vmem:[#allocation8 + $0x28] sm:$0xf]
        %v855 = vld [vmem:[#allocation8 + $0x2c] sm:$0xf]
        %v856 = vld [vmem:[#allocation8 + $0x30] sm:$0xf]
        %v857 = vld [vmem:[#allocation8 + $0x34] sm:$0xf]
        %v858 = vld [vmem:[#allocation8 + $0x38] sm:$0xf]
        %v859 = vld [vmem:[#allocation8 + $0x3c] sm:$0xf]
        %v860 = vld [vmem:[%s7] sm:$0x1]
        %v862 = vlaneseq
        %v863 = vshrl.u32 %v862, 7
        %v864 = vsub.s32 0, %v863
        %v865 = vrot.slane %v860, %v864
        %v883 = vunpack.c.l.b16 %v844
        %v884 = vunpack.c.l.b16 %v845
        %v885 = vunpack.c.l.b16 %v846
        %v886 = vunpack.c.l.b16 %v847
        %v887 = vunpack.c.l.b16 %v848
        %v888 = vunpack.c.l.b16 %v849
        %v889 = vunpack.c.l.b16 %v850
        %v890 = vunpack.c.l.b16 %v851
        %v891 = vunpack.c.l.b16 %v852
        %v892 = vunpack.c.l.b16 %v853
        %v893 = vunpack.c.l.b16 %v854
        %v894 = vunpack.c.l.b16 %v855
        %v895 = vunpack.c.l.b16 %v856
        %v896 = vunpack.c.l.b16 %v857
        %v897 = vunpack.c.l.b16 %v858
        %v898 = vunpack.c.l.b16 %v859
        %v899 = vpack.c.b16 %v884, %v883
        %v900 = vpack.c.b16 %v886, %v885
        %v901 = vpack.c.b16 %v888, %v887
        %v902 = vpack.c.b16 %v890, %v889
        %v903 = vpack.c.b16 %v892, %v891
        %v904 = vpack.c.b16 %v894, %v893
        %v905 = vpack.c.b16 %v896, %v895
        %v906 = vpack.c.b16 %v898, %v897
        %915 = vmatprep.subr.bf16.mxu0 0
        %916 = vmatpush1.bf16.msra.mxu0 %v899
        %917 = vmatprep.subr.bf16.mxu0 0
        %918 = vmatpush1.bf16.msra.mxu0 %v900
        %919 = vmatprep.subr.bf16.mxu0 0
        %920 = vmatpush1.bf16.msra.mxu0 %v901
        %921 = vmatprep.subr.bf16.mxu0 0
        %922 = vmatpush1.bf16.msra.mxu0 %v902
        %923 = vmatprep.subr.bf16.mxu0 0
        %924 = vmatpush1.bf16.msra.mxu0 %v903
        %925 = vmatprep.subr.bf16.mxu0 0
        %926 = vmatpush1.bf16.msra.mxu0 %v904
        %927 = vmatprep.subr.bf16.mxu0 0
        %928 = vmatpush1.bf16.msra.mxu0 %v905
        %929 = vmatprep.subr.bf16.mxu0 0
        %930 = vmatpush1.bf16.msra.mxu0 %v906
        %931 = vmatprep.subr.bf16.mxu0 0
        %932 = vmatpush1.bf16.msra.mxu0 0
        %933 = vmatprep.subr.bf16.mxu0 0
        %934 = vmatpush1.bf16.msra.mxu0 0
        %935 = vmatprep.subr.bf16.mxu0 0
        %936 = vmatpush1.bf16.msra.mxu0 0
        %937 = vmatprep.subr.bf16.mxu0 0
        %938 = vmatpush1.bf16.msra.mxu0 0
        %939 = vmatprep.subr.bf16.mxu0 0
        %940 = vmatpush1.bf16.msra.mxu0 0
        %941 = vmatprep.subr.bf16.mxu0 0
        %942 = vmatpush1.bf16.msra.mxu0 0
        %943 = vmatprep.subr.bf16.mxu0 0
        %944 = vmatpush1.bf16.msra.mxu0 0
        %945 = vmatprep.subr.bf16.mxu0 0
        %946 = vmatpush1.bf16.msra.mxu0 0
        %947 = vmatprep.mubr.bf16.mxu0 0
        %948 = vmatmul.mubr.bf16.gmra.mrb[0].mxu0 %v700
        %v949 = vpop.f32.mrb[0].mxu0
        %v950 = vadd.f32 %v865, %v949
        %v951 = vpop.f32.mrb[0].mxu0
        %v952 = vpop.f32.mrb[0].mxu0
        %v953 = vadd.f32 %v865, %v952
        %v954 = vpop.f32.mrb[0].mxu0
        %955 = vmatprep.mubr.bf16.mxu0 0
        %956 = vmatmul.mubr.bf16.gmra.mrb[0].mxu0 %v701
        %v957 = vpop.f32.mrb[0].mxu0
        %v958 = vadd.f32 %v865, %v957
        %v959 = vpop.f32.mrb[0].mxu0
        %v960 = vpop.f32.mrb[0].mxu0
        %v961 = vadd.f32 %v865, %v960
        %v962 = vpop.f32.mrb[0].mxu0
        %963 = vmatprep.mubr.bf16.mxu0 0
        %964 = vmatmul.mubr.bf16.gmra.mrb[0].mxu0 %v702
        %v965 = vpop.f32.mrb[0].mxu0
        %v966 = vadd.f32 %v865, %v965
        %v967 = vpop.f32.mrb[0].mxu0
        %v968 = vpop.f32.mrb[0].mxu0
        %v969 = vadd.f32 %v865, %v968
        %v970 = vpop.f32.mrb[0].mxu0
        %971 = vmatprep.mubr.bf16.mxu0 0
        %972 = vmatmul.mubr.bf16.gmra.mrb[0].mxu0 %v703
        %v973 = vpop.f32.mrb[0].mxu0
        %v974 = vadd.f32 %v865, %v973
        %v975 = vpop.f32.mrb[0].mxu0
        %v976 = vpop.f32.mrb[0].mxu0
        %v977 = vadd.f32 %v865, %v976
        %v978 = vpop.f32.mrb[0].mxu0
        %979 = vdwg.mxu0
        %v980 = vpack.c.bf16 %v953, %v950
        %v981 = vpack.c.bf16 %v961, %v958
        %v982 = vpack.c.bf16 %v969, %v966
        %v983 = vpack.c.bf16 %v977, %v974
        %v984 = vld [vmem:[#allocation10] sm:$0xf]
        %v985 = vld [vmem:[#allocation10 + $0x4] sm:$0xf]
        %v986 = vld [vmem:[#allocation10 + $0x8] sm:$0xf]
        %v987 = vld [vmem:[#allocation10 + $0xc] sm:$0xf]
        %v988 = vld [vmem:[#allocation10 + $0x10] sm:$0xf]
        %v989 = vld [vmem:[#allocation10 + $0x14] sm:$0xf]
        %v990 = vld [vmem:[#allocation10 + $0x18] sm:$0xf]
        %v991 = vld [vmem:[#allocation10 + $0x1c] sm:$0xf]
        %v992 = vld [vmem:[#allocation10 + $0x20] sm:$0xf]
        %v993 = vld [vmem:[#allocation10 + $0x24] sm:$0xf]
        %v994 = vld [vmem:[#allocation10 + $0x28] sm:$0xf]
        %v995 = vld [vmem:[#allocation10 + $0x2c] sm:$0xf]
        %v996 = vld [vmem:[#allocation10 + $0x30] sm:$0xf]
        %v997 = vld [vmem:[#allocation10 + $0x34] sm:$0xf]
        %v998 = vld [vmem:[#allocation10 + $0x38] sm:$0xf]
        %v999 = vld [vmem:[#allocation10 + $0x3c] sm:$0xf]
        %v1000 = vld [vmem:[%s8] sm:$0x1]
        %v1002 = vlaneseq
        %v1003 = vshrl.u32 %v1002, 7
        %v1004 = vsub.s32 0, %v1003
        %v1005 = vrot.slane %v1000, %v1004
        %v1023 = vunpack.c.l.b16 %v984
        %v1024 = vunpack.c.l.b16 %v985
        %v1025 = vunpack.c.l.b16 %v986
        %v1026 = vunpack.c.l.b16 %v987
        %v1027 = vunpack.c.l.b16 %v988
        %v1028 = vunpack.c.l.b16 %v989
        %v1029 = vunpack.c.l.b16 %v990
        %v1030 = vunpack.c.l.b16 %v991
        %v1031 = vunpack.c.l.b16 %v992
        %v1032 = vunpack.c.l.b16 %v993
        %v1033 = vunpack.c.l.b16 %v994
        %v1034 = vunpack.c.l.b16 %v995
        %v1035 = vunpack.c.l.b16 %v996
        %v1036 = vunpack.c.l.b16 %v997
        %v1037 = vunpack.c.l.b16 %v998
        %v1038 = vunpack.c.l.b16 %v999
        %v1039 = vpack.c.b16 %v1024, %v1023
        %v1040 = vpack.c.b16 %v1026, %v1025
        %v1041 = vpack.c.b16 %v1028, %v1027
        %v1042 = vpack.c.b16 %v1030, %v1029
        %v1043 = vpack.c.b16 %v1032, %v1031
        %v1044 = vpack.c.b16 %v1034, %v1033
        %v1045 = vpack.c.b16 %v1036, %v1035
        %v1046 = vpack.c.b16 %v1038, %v1037
        %1055 = vmatprep.subr.bf16.mxu0 0
        %1056 = vmatpush1.bf16.msra.mxu0 %v1039
        %1057 = vmatprep.subr.bf16.mxu0 0
        %1058 = vmatpush1.bf16.msra.mxu0 %v1040
        %1059 = vmatprep.subr.bf16.mxu0 0
        %1060 = vmatpush1.bf16.msra.mxu0 %v1041
        %1061 = vmatprep.subr.bf16.mxu0 0
        %1062 = vmatpush1.bf16.msra.mxu0 %v1042
        %1063 = vmatprep.subr.bf16.mxu0 0
        %1064 = vmatpush1.bf16.msra.mxu0 %v1043
        %1065 = vmatprep.subr.bf16.mxu0 0
        %1066 = vmatpush1.bf16.msra.mxu0 %v1044
        %1067 = vmatprep.subr.bf16.mxu0 0
        %1068 = vmatpush1.bf16.msra.mxu0 %v1045
        %1069 = vmatprep.subr.bf16.mxu0 0
        %1070 = vmatpush1.bf16.msra.mxu0 %v1046
        %1071 = vmatprep.subr.bf16.mxu0 0
        %1072 = vmatpush1.bf16.msra.mxu0 0
        %1073 = vmatprep.subr.bf16.mxu0 0
        %1074 = vmatpush1.bf16.msra.mxu0 0
        %1075 = vmatprep.subr.bf16.mxu0 0
        %1076 = vmatpush1.bf16.msra.mxu0 0
        %1077 = vmatprep.subr.bf16.mxu0 0
        %1078 = vmatpush1.bf16.msra.mxu0 0
        %1079 = vmatprep.subr.bf16.mxu0 0
        %1080 = vmatpush1.bf16.msra.mxu0 0
        %1081 = vmatprep.subr.bf16.mxu0 0
        %1082 = vmatpush1.bf16.msra.mxu0 0
        %1083 = vmatprep.subr.bf16.mxu0 0
        %1084 = vmatpush1.bf16.msra.mxu0 0
        %1085 = vmatprep.subr.bf16.mxu0 0
        %1086 = vmatpush1.bf16.msra.mxu0 0
        %1087 = vmatprep.mubr.bf16.mxu0 0
        %1088 = vmatmul.mubr.bf16.gmra.mrb[0].mxu0 %v700
        %v1089 = vpop.f32.mrb[0].mxu0
        %v1090 = vadd.f32 %v1005, %v1089
        %v1091 = vpop.f32.mrb[0].mxu0
        %v1092 = vpop.f32.mrb[0].mxu0
        %v1093 = vadd.f32 %v1005, %v1092
        %v1094 = vpop.f32.mrb[0].mxu0
        %1095 = vmatprep.mubr.bf16.mxu0 0
        %1096 = vmatmul.mubr.bf16.gmra.mrb[0].mxu0 %v701
        %v1097 = vpop.f32.mrb[0].mxu0
        %v1098 = vadd.f32 %v1005, %v1097
        %v1099 = vpop.f32.mrb[0].mxu0
        %v1100 = vpop.f32.mrb[0].mxu0
        %v1101 = vadd.f32 %v1005, %v1100
        %v1102 = vpop.f32.mrb[0].mxu0
        %1103 = vmatprep.mubr.bf16.mxu0 0
        %1104 = vmatmul.mubr.bf16.gmra.mrb[0].mxu0 %v702
        %v1105 = vpop.f32.mrb[0].mxu0
        %v1106 = vadd.f32 %v1005, %v1105
        %v1107 = vpop.f32.mrb[0].mxu0
        %v1108 = vpop.f32.mrb[0].mxu0
        %v1109 = vadd.f32 %v1005, %v1108
        %v1110 = vpop.f32.mrb[0].mxu0
        %1111 = vmatprep.mubr.bf16.mxu0 0
        %1112 = vmatmul.mubr.bf16.gmra.mrb[0].mxu0 %v703
        %v1113 = vpop.f32.mrb[0].mxu0
        %v1114 = vadd.f32 %v1005, %v1113
        %v1115 = vpop.f32.mrb[0].mxu0
        %v1116 = vpop.f32.mrb[0].mxu0
        %v1117 = vadd.f32 %v1005, %v1116
        %v1118 = vpop.f32.mrb[0].mxu0
        %1119 = vdwg.mxu0
        %v1120 = vpack.c.bf16 %v1093, %v1090
        %v1121 = vpack.c.bf16 %v1101, %v1098
        %v1122 = vpack.c.bf16 %v1109, %v1106
        %v1123 = vpack.c.bf16 %v1117, %v1114
        loop: start=0, step=1, limit=4
        $region97: #{tpu_custom_call.1} parent=67 // loop_pre_header
          _
        $region98: #{tpu_custom_call.1} parent=67 // loop_header
          %s1125 = sphi 0, %s1129
          %p1126 = scmp.ge.s32.totalorder %s1125, 4
          %v1130 = vphi 0.0, %v1421
          %v1131 = vphi 0.0, %v1422
          %v1132 = vphi 0.0, %v1423
          %v1133 = vphi 0.0, %v1424
          %v1134 = vphi 0.0, %v1425
          %v1135 = vphi 0.0, %v1426
          %v1136 = vphi 0.0, %v1427
          %v1137 = vphi 0.0, %v1428
        $region99: #{tpu_custom_call.1} parent=67 // loop_header_branch
          %1128 = sbr.rel (%p1126) target = $region103
        $region100: #{tpu_custom_call.1} parent=67 // loop_body
          %s1138 = smul.u32 %s1125, 6
          %v1139 = vstv %s1138
          %vm1140 = vcmp.ge.s32.totalorder %v699, %v1139
          %s1141 = sadd.s32 %s1125, 1
          %s1142 = smul.u32 %s1141, 6
          %v1143 = vstv %s1142
          %vm1144 = vcmp.lt.s32.totalorder %v699, %v1143
          %vm1145 = vmand %vm1140, %vm1144
          %v1146 = vsel %vm1145, 1, 0
          %vm1147 = vcmp.eq.s32.totalorder %v1146, 1
          %vm1148 = vmpackc.low %vm1147, %vm1147
          %v1149 = vsel %vm1148, 65537, 0
          %v1150 = vlaneseq
          %v1151 = vshrl.u32 %v1150, 7
          %v1152 = vsub.s32 0, %v1151
          %v1153 = vrot.slane %v1149, %v1152
          %vm1154 = vcmp.ne.s16.totalorder %v1153, 0
          %v1155 = vsel %vm1154, %v840, 0
          %v1156 = vsel %vm1154, %v841, 0
          %v1157 = vsel %vm1154, %v842, 0
          %v1158 = vsel %vm1154, %v843, 0
          %s1159 = smul.u32 %s1125, 8
          %s1160 = smul.addr %s1159, 4
          %s1161 = scalar_lea.vmem [#allocation11], %s1160
          %v1162 = vld [vmem:[%s1161] sm:$0xf]
          %v1163 = vld [vmem:[%s1161 + $0x4] sm:$0xf]
          %v1164 = vld [vmem:[%s1161 + $0x8] sm:$0xf]
          %v1165 = vld [vmem:[%s1161 + $0xc] sm:$0xf]
          %v1166 = vld [vmem:[%s1161 + $0x10] sm:$0xf]
          %v1167 = vld [vmem:[%s1161 + $0x14] sm:$0xf]
          %v1168 = vld [vmem:[%s1161 + $0x18] sm:$0xf]
          %v1169 = vld [vmem:[%s1161 + $0x1c] sm:$0xf]
          %v1170 = vunpack.c.l.bf16 %v1162
          %v1171 = vunpack.c.l.bf16 %v1163
          %v1172 = vunpack.c.l.bf16 %v1164
          %v1173 = vunpack.c.l.bf16 %v1165
          %v1174 = vunpack.c.l.bf16 %v1166
          %v1175 = vunpack.c.l.bf16 %v1167
          %v1176 = vunpack.c.l.bf16 %v1168
          %v1177 = vunpack.c.l.bf16 %v1169
          %1178 = vmatprep.subr.bf16.mxu0 0
          %1179 = vmatpush1.bf16.xpose.msra.mxu0 %v980
          %1180 = vmatprep.subr.bf16.mxu0 0
          %1181 = vmatpush1.bf16.xpose.msra.mxu0 %v981
          %1182 = vmatprep.subr.bf16.mxu0 0
          %1183 = vmatpush1.bf16.xpose.msra.mxu0 %v982
          %1184 = vmatprep.subr.bf16.mxu0 0
          %1185 = vmatpush1.bf16.xpose.msra.mxu0 %v983
          %1186 = vmatprep.subr.bf16.mxu0 0
          %1187 = vmatpush1.bf16.xpose.msra.mxu0 0
          %1188 = vmatprep.subr.bf16.mxu0 0
          %1189 = vmatpush1.bf16.xpose.msra.mxu0 0
          %1190 = vmatprep.subr.bf16.mxu0 0
          %1191 = vmatpush1.bf16.xpose.msra.mxu0 0
          %1192 = vmatprep.subr.bf16.mxu0 0
          %1193 = vmatpush1.bf16.xpose.msra.mxu0 0
          %1194 = vmatprep.subr.bf16.mxu0 0
          %1195 = vmatpush1.bf16.xpose.msra.mxu0 0
          %1196 = vmatprep.subr.bf16.mxu0 0
          %1197 = vmatpush1.bf16.xpose.msra.mxu0 0
          %1198 = vmatprep.subr.bf16.mxu0 0
          %1199 = vmatpush1.bf16.xpose.msra.mxu0 0
          %1200 = vmatprep.subr.bf16.mxu0 0
          %1201 = vmatpush1.bf16.xpose.msra.mxu0 0
          %1202 = vmatprep.subr.bf16.mxu0 0
          %1203 = vmatpush1.bf16.xpose.msra.mxu0 0
          %1204 = vmatprep.subr.bf16.mxu0 0
          %1205 = vmatpush1.bf16.xpose.msra.mxu0 0
          %1206 = vmatprep.subr.bf16.mxu0 0
          %1207 = vmatpush1.bf16.xpose.msra.mxu0 0
          %1208 = vmatprep.subr.bf16.mxu0 0
          %1209 = vmatpush1.bf16.xpose.msra.mxu0 0
          %1210 = vmatprep.mubr.bf16.mxu0 0
          %1211 = vmatmul.mubr.bf16.gmra.mrb[0].mxu0 %v1155
          %v1212 = vpop.f32.mrb[0].mxu0
          %v1213 = vadd.f32 %v1170, %v1212
          %v1214 = vpop.f32.mrb[0].mxu0
          %v1215 = vpop.f32.mrb[0].mxu0
          %v1216 = vadd.f32 %v1171, %v1215
          %v1217 = vpop.f32.mrb[0].mxu0
          %1218 = vmatprep.mubr.bf16.mxu0 0
          %1219 = vmatmul.mubr.bf16.gmra.mrb[0].mxu0 %v1156
          %v1220 = vpop.f32.mrb[0].mxu0
          %v1221 = vadd.f32 %v1172, %v1220
          %v1222 = vpop.f32.mrb[0].mxu0
          %v1223 = vpop.f32.mrb[0].mxu0
          %v1224 = vadd.f32 %v1173, %v1223
          %v1225 = vpop.f32.mrb[0].mxu0
          %1226 = vmatprep.mubr.bf16.mxu0 0
          %1227 = vmatmul.mubr.bf16.gmra.mrb[0].mxu0 %v1157
          %v1228 = vpop.f32.mrb[0].mxu0
          %v1229 = vadd.f32 %v1174, %v1228
          %v1230 = vpop.f32.mrb[0].mxu0
          %v1231 = vpop.f32.mrb[0].mxu0
          %v1232 = vadd.f32 %v1175, %v1231
          %v1233 = vpop.f32.mrb[0].mxu0
          %1234 = vmatprep.mubr.bf16.mxu0 0
          %1235 = vmatmul.mubr.bf16.gmra.mrb[0].mxu0 %v1158
          %v1236 = vpop.f32.mrb[0].mxu0
          %v1237 = vadd.f32 %v1176, %v1236
          %v1238 = vpop.f32.mrb[0].mxu0
          %v1239 = vpop.f32.mrb[0].mxu0
          %v1240 = vadd.f32 %v1177, %v1239
          %v1241 = vpop.f32.mrb[0].mxu0
          %1242 = vdwg.mxu0
          %vm1243 = vcmask 523264
          %v1244 = vsel %vm1243, %v1213, -inf
          %1245 = vmax.xlane.f32.xlu0 %v1244
          %v1246 = vpop.xlane.xlu0 %1245
          %v1247 = vsel %vm1243, %v1216, -inf
          %1248 = vmax.xlane.f32.xlu0 %v1247
          %v1249 = vpop.xlane.xlu0 %1248
          %v1250 = vsel %vm1243, %v1221, -inf
          %1251 = vmax.xlane.f32.xlu0 %v1250
          %v1252 = vpop.xlane.xlu0 %1251
          %v1253 = vsel %vm1243, %v1224, -inf
          %1254 = vmax.xlane.f32.xlu0 %v1253
          %v1255 = vpop.xlane.xlu0 %1254
          %v1256 = vsel %vm1243, %v1229, -inf
          %1257 = vmax.xlane.f32.xlu0 %v1256
          %v1258 = vpop.xlane.xlu0 %1257
          %v1259 = vsel %vm1243, %v1232, -inf
          %1260 = vmax.xlane.f32.xlu0 %v1259
          %v1261 = vpop.xlane.xlu0 %1260
          %v1262 = vsel %vm1243, %v1237, -inf
          %1263 = vmax.xlane.f32.xlu0 %v1262
          %v1264 = vpop.xlane.xlu0 %1263
          %v1265 = vsel %vm1243, %v1240, -inf
          %1266 = vmax.xlane.f32.xlu0 %v1265
          %v1267 = vpop.xlane.xlu0 %1266
          %v1268 = vsub.f32 %v1213, %v1246
          %v1269 = vsub.f32 %v1216, %v1249
          %v1270 = vsub.f32 %v1221, %v1252
          %v1271 = vsub.f32 %v1224, %v1255
          %v1272 = vsub.f32 %v1229, %v1258
          %v1273 = vsub.f32 %v1232, %v1261
          %v1274 = vsub.f32 %v1237, %v1264
          %v1275 = vsub.f32 %v1240, %v1267
          %v1276 = vmul.f32 %v1268, 1.442695
          %v1277 = vpow.pop %v1276
          %v1278 = vmul.f32 %v1269, 1.442695
          %v1279 = vpow.pop %v1278
          %v1280 = vmul.f32 %v1270, 1.442695
          %v1281 = vpow.pop %v1280
          %v1282 = vmul.f32 %v1271, 1.442695
          %v1283 = vpow.pop %v1282
          %v1284 = vmul.f32 %v1272, 1.442695
          %v1285 = vpow.pop %v1284
          %v1286 = vmul.f32 %v1273, 1.442695
          %v1287 = vpow.pop %v1286
          %v1288 = vmul.f32 %v1274, 1.442695
          %v1289 = vpow.pop %v1288
          %v1290 = vmul.f32 %v1275, 1.442695
          %v1291 = vpow.pop %v1290
          %v1292 = vsel %vm1243, %v1277, 0.0
          %1293 = vadd.xlane.f32.xlu0 %v1292
          %v1294 = vpop.xlane.xlu0 %1293
          %v1295 = vsel %vm1243, %v1279, 0.0
          %1296 = vadd.xlane.f32.xlu0 %v1295
          %v1297 = vpop.xlane.xlu0 %1296
          %v1298 = vsel %vm1243, %v1281, 0.0
          %1299 = vadd.xlane.f32.xlu0 %v1298
          %v1300 = vpop.xlane.xlu0 %1299
          %v1301 = vsel %vm1243, %v1283, 0.0
          %1302 = vadd.xlane.f32.xlu0 %v1301
          %v1303 = vpop.xlane.xlu0 %1302
          %v1304 = vsel %vm1243, %v1285, 0.0
          %1305 = vadd.xlane.f32.xlu0 %v1304
          %v1306 = vpop.xlane.xlu0 %1305
          %v1307 = vsel %vm1243, %v1287, 0.0
          %1308 = vadd.xlane.f32.xlu0 %v1307
          %v1309 = vpop.xlane.xlu0 %1308
          %v1310 = vsel %vm1243, %v1289, 0.0
          %1311 = vadd.xlane.f32.xlu0 %v1310
          %v1312 = vpop.xlane.xlu0 %1311
          %v1313 = vsel %vm1243, %v1291, 0.0
          %1314 = vadd.xlane.f32.xlu0 %v1313
          %v1315 = vpop.xlane.xlu0 %1314
          %v1316 = vrcp.pop %v1294
          %v1317 = vrcp.pop %v1297
          %v1318 = vrcp.pop %v1300
          %v1319 = vrcp.pop %v1303
          %v1320 = vrcp.pop %v1306
          %v1321 = vrcp.pop %v1309
          %v1322 = vrcp.pop %v1312
          %v1323 = vrcp.pop %v1315
          %v1324 = vpack.c.bf16 %v1279, %v1277
          %v1325 = vpack.c.bf16 %v1283, %v1281
          %v1326 = vpack.c.bf16 %v1287, %v1285
          %v1327 = vpack.c.bf16 %v1291, %v1289
          %v1329 = vsel %vm1243, %v1324, 0
          %v1332 = vsel %vm1243, %v1325, 0
          %v1335 = vsel %vm1243, %v1326, 0
          %v1338 = vsel %vm1243, %v1327, 0
          %1340 = vmatprep.subr.bf16.mxu0 0
          %1341 = vmatpush1.bf16.msra.mxu0 %v1120
          %1342 = vmatprep.subr.bf16.mxu0 0
          %1343 = vmatpush1.bf16.msra.mxu0 %v1121
          %1344 = vmatprep.subr.bf16.mxu0 0
          %1345 = vmatpush1.bf16.msra.mxu0 %v1122
          %1346 = vmatprep.subr.bf16.mxu0 0
          %1347 = vmatpush1.bf16.msra.mxu0 %v1123
          %1348 = vmatprep.subr.bf16.mxu0 0
          %1349 = vmatpush1.bf16.msra.mxu0 0
          %1350 = vmatprep.subr.bf16.mxu0 0
          %1351 = vmatpush1.bf16.msra.mxu0 0
          %1352 = vmatprep.subr.bf16.mxu0 0
          %1353 = vmatpush1.bf16.msra.mxu0 0
          %1354 = vmatprep.subr.bf16.mxu0 0
          %1355 = vmatpush1.bf16.msra.mxu0 0
          %1356 = vmatprep.subr.bf16.mxu0 0
          %1357 = vmatpush1.bf16.msra.mxu0 0
          %1358 = vmatprep.subr.bf16.mxu0 0
          %1359 = vmatpush1.bf16.msra.mxu0 0
          %1360 = vmatprep.subr.bf16.mxu0 0
          %1361 = vmatpush1.bf16.msra.mxu0 0
          %1362 = vmatprep.subr.bf16.mxu0 0
          %1363 = vmatpush1.bf16.msra.mxu0 0
          %1364 = vmatprep.subr.bf16.mxu0 0
          %1365 = vmatpush1.bf16.msra.mxu0 0
          %1366 = vmatprep.subr.bf16.mxu0 0
          %1367 = vmatpush1.bf16.msra.mxu0 0
          %1368 = vmatprep.subr.bf16.mxu0 0
          %1369 = vmatpush1.bf16.msra.mxu0 0
          %1370 = vmatprep.subr.bf16.mxu0 0
          %1371 = vmatpush1.bf16.msra.mxu0 0
          %1372 = vmatprep.mubr.bf16.mxu0 0
          %1373 = vmatmul.mubr.bf16.gmra.mrb[0].mxu0 %v1329
          %v1374 = vpop.f32.mrb[0].mxu0
          %v1375 = vadd.f32 0.0, %v1374
          %v1376 = vpop.f32.mrb[0].mxu0
          %v1377 = vpop.f32.mrb[0].mxu0
          %v1378 = vadd.f32 0.0, %v1377
          %v1379 = vpop.f32.mrb[0].mxu0
          %1380 = vmatprep.mubr.bf16.mxu0 0
          %1381 = vmatmul.mubr.bf16.gmra.mrb[0].mxu0 %v1332
          %v1382 = vpop.f32.mrb[0].mxu0
          %v1383 = vadd.f32 0.0, %v1382
          %v1384 = vpop.f32.mrb[0].mxu0
          %v1385 = vpop.f32.mrb[0].mxu0
          %v1386 = vadd.f32 0.0, %v1385
          %v1387 = vpop.f32.mrb[0].mxu0
          %1388 = vmatprep.mubr.bf16.mxu0 0
          %1389 = vmatmul.mubr.bf16.gmra.mrb[0].mxu0 %v1335
          %v1390 = vpop.f32.mrb[0].mxu0
          %v1391 = vadd.f32 0.0, %v1390
          %v1392 = vpop.f32.mrb[0].mxu0
          %v1393 = vpop.f32.mrb[0].mxu0
          %v1394 = vadd.f32 0.0, %v1393
          %v1395 = vpop.f32.mrb[0].mxu0
          %1396 = vmatprep.mubr.bf16.mxu0 0
          %1397 = vmatmul.mubr.bf16.gmra.mrb[0].mxu0 %v1338
          %v1398 = vpop.f32.mrb[0].mxu0
          %v1399 = vadd.f32 0.0, %v1398
          %v1400 = vpop.f32.mrb[0].mxu0
          %v1401 = vpop.f32.mrb[0].mxu0
          %v1402 = vadd.f32 0.0, %v1401
          %v1403 = vpop.f32.mrb[0].mxu0
          %1404 = vdwg.mxu0
          %v1405 = vmul.f32 %v1375, %v1316
          %v1406 = vmul.f32 %v1378, %v1317
          %v1407 = vmul.f32 %v1383, %v1318
          %v1408 = vmul.f32 %v1386, %v1319
          %v1409 = vmul.f32 %v1391, %v1320
          %v1410 = vmul.f32 %v1394, %v1321
          %v1411 = vmul.f32 %v1399, %v1322
          %v1412 = vmul.f32 %v1402, %v1323
          %v1413 = vsel %vm1147, %v1405, 0.0
          %v1414 = vsel %vm1147, %v1406, 0.0
          %v1415 = vsel %vm1147, %v1407, 0.0
          %v1416 = vsel %vm1147, %v1408, 0.0
          %v1417 = vsel %vm1147, %v1409, 0.0
          %v1418 = vsel %vm1147, %v1410, 0.0
          %v1419 = vsel %vm1147, %v1411, 0.0
          %v1420 = vsel %vm1147, %v1412, 0.0
          %v1421 = vadd.f32 %v1130, %v1413
          %v1422 = vadd.f32 %v1131, %v1414
          %v1423 = vadd.f32 %v1132, %v1415
          %v1424 = vadd.f32 %v1133, %v1416
          %v1425 = vadd.f32 %v1134, %v1417
          %v1426 = vadd.f32 %v1135, %v1418
          %v1427 = vadd.f32 %v1136, %v1419
          %v1428 = vadd.f32 %v1137, %v1420
        $region101: #{tpu_custom_call.1} parent=67 // loop_footer
          %s1129 = sadd.s32 1, %s1125
        $region102: #{tpu_custom_call.1} parent=67 // loop_footer_branch
          %1124 = sbr.rel target = $region98
        $region103: #{tpu_custom_call.1} parent=67 // loop_exit
          _
        %v1429 = vpack.c.bf16 %v1131, %v1130
        %v1430 = vpack.c.bf16 %v1133, %v1132
        %v1431 = vpack.c.bf16 %v1135, %v1134
        %v1432 = vpack.c.bf16 %v1137, %v1136
        %v1433 = vld [vmem:[#allocation13] sm:$0xf]
        %v1434 = vld [vmem:[#allocation13 + $0x4] sm:$0xf]
        %v1435 = vld [vmem:[#allocation13 + $0x8] sm:$0xf]
        %v1436 = vld [vmem:[#allocation13 + $0xc] sm:$0xf]
        %v1437 = vld [vmem:[#allocation13 + $0x10] sm:$0xf]
        %v1438 = vld [vmem:[#allocation13 + $0x14] sm:$0xf]
        %v1439 = vld [vmem:[#allocation13 + $0x18] sm:$0xf]
        %v1440 = vld [vmem:[#allocation13 + $0x1c] sm:$0xf]
        %v1441 = vld [vmem:[#allocation13 + $0x20] sm:$0xf]
        %v1442 = vld [vmem:[#allocation13 + $0x24] sm:$0xf]
        %v1443 = vld [vmem:[#allocation13 + $0x28] sm:$0xf]
        %v1444 = vld [vmem:[#allocation13 + $0x2c] sm:$0xf]
        %v1445 = vld [vmem:[#allocation13 + $0x30] sm:$0xf]
        %v1446 = vld [vmem:[#allocation13 + $0x34] sm:$0xf]
        %v1447 = vld [vmem:[#allocation13 + $0x38] sm:$0xf]
        %v1448 = vld [vmem:[#allocation13 + $0x3c] sm:$0xf]
        %v1449 = vld [vmem:[%s11] sm:$0x1]
        %v1451 = vlaneseq
        %v1452 = vshrl.u32 %v1451, 7
        %v1453 = vsub.s32 0, %v1452
        %v1454 = vrot.slane %v1449, %v1453
        %v1472 = vunpack.c.l.b16 %v1433
        %v1473 = vunpack.c.l.b16 %v1434
        %v1474 = vunpack.c.l.b16 %v1435
        %v1475 = vunpack.c.l.b16 %v1436
        %v1476 = vunpack.c.l.b16 %v1437
        %v1477 = vunpack.c.l.b16 %v1438
        %v1478 = vunpack.c.l.b16 %v1439
        %v1479 = vunpack.c.l.b16 %v1440
        %v1480 = vunpack.c.l.b16 %v1441
        %v1481 = vunpack.c.l.b16 %v1442
        %v1482 = vunpack.c.l.b16 %v1443
        %v1483 = vunpack.c.l.b16 %v1444
        %v1484 = vunpack.c.l.b16 %v1445
        %v1485 = vunpack.c.l.b16 %v1446
        %v1486 = vunpack.c.l.b16 %v1447
        %v1487 = vunpack.c.l.b16 %v1448
        %v1488 = vpack.c.b16 %v1473, %v1472
        %v1489 = vpack.c.b16 %v1475, %v1474
        %v1490 = vpack.c.b16 %v1477, %v1476
        %v1491 = vpack.c.b16 %v1479, %v1478
        %v1492 = vpack.c.b16 %v1481, %v1480
        %v1493 = vpack.c.b16 %v1483, %v1482
        %v1494 = vpack.c.b16 %v1485, %v1484
        %v1495 = vpack.c.b16 %v1487, %v1486
        %1504 = vmatprep.subr.bf16.mxu0 0
        %1505 = vmatpush1.bf16.msra.mxu0 %v1488
        %1506 = vmatprep.subr.bf16.mxu0 0
        %1507 = vmatpush1.bf16.msra.mxu0 %v1489
        %1508 = vmatprep.subr.bf16.mxu0 0
        %1509 = vmatpush1.bf16.msra.mxu0 %v1490
        %1510 = vmatprep.subr.bf16.mxu0 0
        %1511 = vmatpush1.bf16.msra.mxu0 %v1491
        %1512 = vmatprep.subr.bf16.mxu0 0
        %1513 = vmatpush1.bf16.msra.mxu0 %v1492
        %1514 = vmatprep.subr.bf16.mxu0 0
        %1515 = vmatpush1.bf16.msra.mxu0 %v1493
        %1516 = vmatprep.subr.bf16.mxu0 0
        %1517 = vmatpush1.bf16.msra.mxu0 %v1494
        %1518 = vmatprep.subr.bf16.mxu0 0
        %1519 = vmatpush1.bf16.msra.mxu0 %v1495
        %1520 = vmatprep.subr.bf16.mxu0 0
        %1521 = vmatpush1.bf16.msra.mxu0 0
        %1522 = vmatprep.subr.bf16.mxu0 0
        %1523 = vmatpush1.bf16.msra.mxu0 0
        %1524 = vmatprep.subr.bf16.mxu0 0
        %1525 = vmatpush1.bf16.msra.mxu0 0
        %1526 = vmatprep.subr.bf16.mxu0 0
        %1527 = vmatpush1.bf16.msra.mxu0 0
        %1528 = vmatprep.subr.bf16.mxu0 0
        %1529 = vmatpush1.bf16.msra.mxu0 0
        %1530 = vmatprep.subr.bf16.mxu0 0
        %1531 = vmatpush1.bf16.msra.mxu0 0
        %1532 = vmatprep.subr.bf16.mxu0 0
        %1533 = vmatpush1.bf16.msra.mxu0 0
        %1534 = vmatprep.subr.bf16.mxu0 0
        %1535 = vmatpush1.bf16.msra.mxu0 0
        %1536 = vmatprep.mubr.bf16.mxu0 0
        %1537 = vmatmul.mubr.bf16.gmra.mrb[0].mxu0 %v1429
        %v1538 = vpop.f32.mrb[0].mxu0
        %v1539 = vadd.f32 %v1454, %v1538
        %v1540 = vpop.f32.mrb[0].mxu0
        %v1541 = vpop.f32.mrb[0].mxu0
        %v1542 = vadd.f32 %v1454, %v1541
        %v1543 = vpop.f32.mrb[0].mxu0
        %1544 = vmatprep.mubr.bf16.mxu0 0
        %1545 = vmatmul.mubr.bf16.gmra.mrb[0].mxu0 %v1430
        %v1546 = vpop.f32.mrb[0].mxu0
        %v1547 = vadd.f32 %v1454, %v1546
        %v1548 = vpop.f32.mrb[0].mxu0
        %v1549 = vpop.f32.mrb[0].mxu0
        %v1550 = vadd.f32 %v1454, %v1549
        %v1551 = vpop.f32.mrb[0].mxu0
        %1552 = vmatprep.mubr.bf16.mxu0 0
        %1553 = vmatmul.mubr.bf16.gmra.mrb[0].mxu0 %v1431
        %v1554 = vpop.f32.mrb[0].mxu0
        %v1555 = vadd.f32 %v1454, %v1554
        %v1556 = vpop.f32.mrb[0].mxu0
        %v1557 = vpop.f32.mrb[0].mxu0
        %v1558 = vadd.f32 %v1454, %v1557
        %v1559 = vpop.f32.mrb[0].mxu0
        %1560 = vmatprep.mubr.bf16.mxu0 0
        %1561 = vmatmul.mubr.bf16.gmra.mrb[0].mxu0 %v1432
        %v1562 = vpop.f32.mrb[0].mxu0
        %v1563 = vadd.f32 %v1454, %v1562
        %v1564 = vpop.f32.mrb[0].mxu0
        %v1565 = vpop.f32.mrb[0].mxu0
        %v1566 = vadd.f32 %v1454, %v1565
        %v1567 = vpop.f32.mrb[0].mxu0
        %1568 = vdwg.mxu0
        %v1569 = vpack.c.bf16 %v1542, %v1539
        %v1570 = vpack.c.bf16 %v1550, %v1547
        %v1571 = vpack.c.bf16 %v1558, %v1555
        %v1572 = vpack.c.bf16 %v1566, %v1563
        %1573 = vmatprep.subr.bf16.mxu0 0
        %1574 = vmatpush1.bf16.msra.mxu0 %v759
        %1575 = vmatprep.subr.bf16.mxu0 0
        %1576 = vmatpush1.bf16.msra.mxu0 %v760
        %1577 = vmatprep.subr.bf16.mxu0 0
        %1578 = vmatpush1.bf16.msra.mxu0 %v761
        %1579 = vmatprep.subr.bf16.mxu0 0
        %1580 = vmatpush1.bf16.msra.mxu0 %v762
        %1581 = vmatprep.subr.bf16.mxu0 0
        %1582 = vmatpush1.bf16.msra.mxu0 %v763
        %1583 = vmatprep.subr.bf16.mxu0 0
        %1584 = vmatpush1.bf16.msra.mxu0 %v764
        %1585 = vmatprep.subr.bf16.mxu0 0
        %1586 = vmatpush1.bf16.msra.mxu0 %v765
        %1587 = vmatprep.subr.bf16.mxu0 0
        %1588 = vmatpush1.bf16.msra.mxu0 %v766
        %1589 = vmatprep.subr.bf16.mxu0 0
        %1590 = vmatpush1.bf16.msra.mxu0 0
        %1591 = vmatprep.subr.bf16.mxu0 0
        %1592 = vmatpush1.bf16.msra.mxu0 0
        %1593 = vmatprep.subr.bf16.mxu0 0
        %1594 = vmatpush1.bf16.msra.mxu0 0
        %1595 = vmatprep.subr.bf16.mxu0 0
        %1596 = vmatpush1.bf16.msra.mxu0 0
        %1597 = vmatprep.subr.bf16.mxu0 0
        %1598 = vmatpush1.bf16.msra.mxu0 0
        %1599 = vmatprep.subr.bf16.mxu0 0
        %1600 = vmatpush1.bf16.msra.mxu0 0
        %1601 = vmatprep.subr.bf16.mxu0 0
        %1602 = vmatpush1.bf16.msra.mxu0 0
        %1603 = vmatprep.subr.bf16.mxu0 0
        %1604 = vmatpush1.bf16.msra.mxu0 0
        %1605 = vmatprep.mubr.bf16.mxu0 0
        %1606 = vmatmul.mubr.bf16.gmra.mrb[0].mxu0 %v1569
        %v1607 = vpop.f32.mrb[0].mxu0
        %v1608 = vadd.f32 %v725, %v1607
        %v1609 = vpop.f32.mrb[0].mxu0
        %v1610 = vpop.f32.mrb[0].mxu0
        %v1611 = vadd.f32 %v725, %v1610
        %v1612 = vpop.f32.mrb[0].mxu0
        %1613 = vmatprep.mubr.bf16.mxu0 0
        %1614 = vmatmul.mubr.bf16.gmra.mrb[0].mxu0 %v1570
        %v1615 = vpop.f32.mrb[0].mxu0
        %v1616 = vadd.f32 %v725, %v1615
        %v1617 = vpop.f32.mrb[0].mxu0
        %v1618 = vpop.f32.mrb[0].mxu0
        %v1619 = vadd.f32 %v725, %v1618
        %v1620 = vpop.f32.mrb[0].mxu0
        %1621 = vmatprep.mubr.bf16.mxu0 0
        %1622 = vmatmul.mubr.bf16.gmra.mrb[0].mxu0 %v1571
        %v1623 = vpop.f32.mrb[0].mxu0
        %v1624 = vadd.f32 %v725, %v1623
        %v1625 = vpop.f32.mrb[0].mxu0
        %v1626 = vpop.f32.mrb[0].mxu0
        %v1627 = vadd.f32 %v725, %v1626
        %v1628 = vpop.f32.mrb[0].mxu0
        %1629 = vmatprep.mubr.bf16.mxu0 0
        %1630 = vmatmul.mubr.bf16.gmra.mrb[0].mxu0 %v1572
        %v1631 = vpop.f32.mrb[0].mxu0
        %v1632 = vadd.f32 %v725, %v1631
        %v1633 = vpop.f32.mrb[0].mxu0
        %v1634 = vpop.f32.mrb[0].mxu0
        %v1635 = vadd.f32 %v725, %v1634
        %v1636 = vpop.f32.mrb[0].mxu0
        %1637 = vdwg.mxu0
        %v1638 = vpack.c.bf16 %v1611, %v1608
        %v1639 = vpack.c.bf16 %v1619, %v1616
        %v1640 = vpack.c.bf16 %v1627, %v1624
        %v1641 = vpack.c.bf16 %v1635, %v1632
        %1642 = vmatprep.subr.bf16.mxu0 0
        %1643 = vmatpush1.bf16.msra.mxu0 %v899
        %1644 = vmatprep.subr.bf16.mxu0 0
        %1645 = vmatpush1.bf16.msra.mxu0 %v900
        %1646 = vmatprep.subr.bf16.mxu0 0
        %1647 = vmatpush1.bf16.msra.mxu0 %v901
        %1648 = vmatprep.subr.bf16.mxu0 0
        %1649 = vmatpush1.bf16.msra.mxu0 %v902
        %1650 = vmatprep.subr.bf16.mxu0 0
        %1651 = vmatpush1.bf16.msra.mxu0 %v903
        %1652 = vmatprep.subr.bf16.mxu0 0
        %1653 = vmatpush1.bf16.msra.mxu0 %v904
        %1654 = vmatprep.subr.bf16.mxu0 0
        %1655 = vmatpush1.bf16.msra.mxu0 %v905
        %1656 = vmatprep.subr.bf16.mxu0 0
        %1657 = vmatpush1.bf16.msra.mxu0 %v906
        %1658 = vmatprep.subr.bf16.mxu0 0
        %1659 = vmatpush1.bf16.msra.mxu0 0
        %1660 = vmatprep.subr.bf16.mxu0 0
        %1661 = vmatpush1.bf16.msra.mxu0 0
        %1662 = vmatprep.subr.bf16.mxu0 0
        %1663 = vmatpush1.bf16.msra.mxu0 0
        %1664 = vmatprep.subr.bf16.mxu0 0
        %1665 = vmatpush1.bf16.msra.mxu0 0
        %1666 = vmatprep.subr.bf16.mxu0 0
        %1667 = vmatpush1.bf16.msra.mxu0 0
        %1668 = vmatprep.subr.bf16.mxu0 0
        %1669 = vmatpush1.bf16.msra.mxu0 0
        %1670 = vmatprep.subr.bf16.mxu0 0
        %1671 = vmatpush1.bf16.msra.mxu0 0
        %1672 = vmatprep.subr.bf16.mxu0 0
        %1673 = vmatpush1.bf16.msra.mxu0 0
        %1674 = vmatprep.mubr.bf16.mxu0 0
        %1675 = vmatmul.mubr.bf16.gmra.mrb[0].mxu0 %v1569
        %v1676 = vpop.f32.mrb[0].mxu0
        %v1677 = vadd.f32 %v865, %v1676
        %v1678 = vpop.f32.mrb[0].mxu0
        %v1679 = vpop.f32.mrb[0].mxu0
        %v1680 = vadd.f32 %v865, %v1679
        %v1681 = vpop.f32.mrb[0].mxu0
        %1682 = vmatprep.mubr.bf16.mxu0 0
        %1683 = vmatmul.mubr.bf16.gmra.mrb[0].mxu0 %v1570
        %v1684 = vpop.f32.mrb[0].mxu0
        %v1685 = vadd.f32 %v865, %v1684
        %v1686 = vpop.f32.mrb[0].mxu0
        %v1687 = vpop.f32.mrb[0].mxu0
        %v1688 = vadd.f32 %v865, %v1687
        %v1689 = vpop.f32.mrb[0].mxu0
        %1690 = vmatprep.mubr.bf16.mxu0 0
        %1691 = vmatmul.mubr.bf16.gmra.mrb[0].mxu0 %v1571
        %v1692 = vpop.f32.mrb[0].mxu0
        %v1693 = vadd.f32 %v865, %v1692
        %v1694 = vpop.f32.mrb[0].mxu0
        %v1695 = vpop.f32.mrb[0].mxu0
        %v1696 = vadd.f32 %v865, %v1695
        %v1697 = vpop.f32.mrb[0].mxu0
        %1698 = vmatprep.mubr.bf16.mxu0 0
        %1699 = vmatmul.mubr.bf16.gmra.mrb[0].mxu0 %v1572
        %v1700 = vpop.f32.mrb[0].mxu0
        %v1701 = vadd.f32 %v865, %v1700
        %v1702 = vpop.f32.mrb[0].mxu0
        %v1703 = vpop.f32.mrb[0].mxu0
        %v1704 = vadd.f32 %v865, %v1703
        %v1705 = vpop.f32.mrb[0].mxu0
        %1706 = vdwg.mxu0
        %v1707 = vpack.c.bf16 %v1680, %v1677
        %v1708 = vpack.c.bf16 %v1688, %v1685
        %v1709 = vpack.c.bf16 %v1696, %v1693
        %v1710 = vpack.c.bf16 %v1704, %v1701
        %1711 = vmatprep.subr.bf16.mxu0 0
        %1712 = vmatpush1.bf16.msra.mxu0 %v1039
        %1713 = vmatprep.subr.bf16.mxu0 0
        %1714 = vmatpush1.bf16.msra.mxu0 %v1040
        %1715 = vmatprep.subr.bf16.mxu0 0
        %1716 = vmatpush1.bf16.msra.mxu0 %v1041
        %1717 = vmatprep.subr.bf16.mxu0 0
        %1718 = vmatpush1.bf16.msra.mxu0 %v1042
        %1719 = vmatprep.subr.bf16.mxu0 0
        %1720 = vmatpush1.bf16.msra.mxu0 %v1043
        %1721 = vmatprep.subr.bf16.mxu0 0
        %1722 = vmatpush1.bf16.msra.mxu0 %v1044
        %1723 = vmatprep.subr.bf16.mxu0 0
        %1724 = vmatpush1.bf16.msra.mxu0 %v1045
        %1725 = vmatprep.subr.bf16.mxu0 0
        %1726 = vmatpush1.bf16.msra.mxu0 %v1046
        %1727 = vmatprep.subr.bf16.mxu0 0
        %1728 = vmatpush1.bf16.msra.mxu0 0
        %1729 = vmatprep.subr.bf16.mxu0 0
        %1730 = vmatpush1.bf16.msra.mxu0 0
        %1731 = vmatprep.subr.bf16.mxu0 0
        %1732 = vmatpush1.bf16.msra.mxu0 0
        %1733 = vmatprep.subr.bf16.mxu0 0
        %1734 = vmatpush1.bf16.msra.mxu0 0
        %1735 = vmatprep.subr.bf16.mxu0 0
        %1736 = vmatpush1.bf16.msra.mxu0 0
        %1737 = vmatprep.subr.bf16.mxu0 0
        %1738 = vmatpush1.bf16.msra.mxu0 0
        %1739 = vmatprep.subr.bf16.mxu0 0
        %1740 = vmatpush1.bf16.msra.mxu0 0
        %1741 = vmatprep.subr.bf16.mxu0 0
        %1742 = vmatpush1.bf16.msra.mxu0 0
        %1743 = vmatprep.mubr.bf16.mxu0 0
        %1744 = vmatmul.mubr.bf16.gmra.mrb[0].mxu0 %v1569
        %v1745 = vpop.f32.mrb[0].mxu0
        %v1746 = vadd.f32 %v1005, %v1745
        %v1747 = vpop.f32.mrb[0].mxu0
        %v1748 = vpop.f32.mrb[0].mxu0
        %v1749 = vadd.f32 %v1005, %v1748
        %v1750 = vpop.f32.mrb[0].mxu0
        %1751 = vmatprep.mubr.bf16.mxu0 0
        %1752 = vmatmul.mubr.bf16.gmra.mrb[0].mxu0 %v1570
        %v1753 = vpop.f32.mrb[0].mxu0
        %v1754 = vadd.f32 %v1005, %v1753
        %v1755 = vpop.f32.mrb[0].mxu0
        %v1756 = vpop.f32.mrb[0].mxu0
        %v1757 = vadd.f32 %v1005, %v1756
        %v1758 = vpop.f32.mrb[0].mxu0
        %1759 = vmatprep.mubr.bf16.mxu0 0
        %1760 = vmatmul.mubr.bf16.gmra.mrb[0].mxu0 %v1571
        %v1761 = vpop.f32.mrb[0].mxu0
        %v1762 = vadd.f32 %v1005, %v1761
        %v1763 = vpop.f32.mrb[0].mxu0
        %v1764 = vpop.f32.mrb[0].mxu0
        %v1765 = vadd.f32 %v1005, %v1764
        %v1766 = vpop.f32.mrb[0].mxu0
        %1767 = vmatprep.mubr.bf16.mxu0 0
        %1768 = vmatmul.mubr.bf16.gmra.mrb[0].mxu0 %v1572
        %v1769 = vpop.f32.mrb[0].mxu0
        %v1770 = vadd.f32 %v1005, %v1769
        %v1771 = vpop.f32.mrb[0].mxu0
        %v1772 = vpop.f32.mrb[0].mxu0
        %v1773 = vadd.f32 %v1005, %v1772
        %v1774 = vpop.f32.mrb[0].mxu0
        %1775 = vdwg.mxu0
        %v1776 = vpack.c.bf16 %v1749, %v1746
        %v1777 = vpack.c.bf16 %v1757, %v1754
        %v1778 = vpack.c.bf16 %v1765, %v1762
        %v1779 = vpack.c.bf16 %v1773, %v1770
        loop: start=0, step=1, limit=4
        $region104: #{tpu_custom_call.1} parent=67 // loop_pre_header
          _
        $region105: #{tpu_custom_call.1} parent=67 // loop_header
          %s1781 = sphi 0, %s1785
          %p1782 = scmp.ge.s32.totalorder %s1781, 4
          %v1786 = vphi 0.0, %v2077
          %v1787 = vphi 0.0, %v2078
          %v1788 = vphi 0.0, %v2079
          %v1789 = vphi 0.0, %v2080
          %v1790 = vphi 0.0, %v2081
          %v1791 = vphi 0.0, %v2082
          %v1792 = vphi 0.0, %v2083
          %v1793 = vphi 0.0, %v2084
        $region106: #{tpu_custom_call.1} parent=67 // loop_header_branch
          %1784 = sbr.rel (%p1782) target = $region110
        $region107: #{tpu_custom_call.1} parent=67 // loop_body
          %s1794 = smul.u32 %s1781, 6
          %v1795 = vstv %s1794
          %vm1796 = vcmp.ge.s32.totalorder %v699, %v1795
          %s1797 = sadd.s32 %s1781, 1
          %s1798 = smul.u32 %s1797, 6
          %v1799 = vstv %s1798
          %vm1800 = vcmp.lt.s32.totalorder %v699, %v1799
          %vm1801 = vmand %vm1796, %vm1800
          %v1802 = vsel %vm1801, 1, 0
          %vm1803 = vcmp.eq.s32.totalorder %v1802, 1
          %vm1804 = vmpackc.low %vm1803, %vm1803
          %v1805 = vsel %vm1804, 65537, 0
          %v1806 = vlaneseq
          %v1807 = vshrl.u32 %v1806, 7
          %v1808 = vsub.s32 0, %v1807
          %v1809 = vrot.slane %v1805, %v1808
          %vm1810 = vcmp.ne.s16.totalorder %v1809, 0
          %v1811 = vsel %vm1810, %v1638, 0
          %v1812 = vsel %vm1810, %v1639, 0
          %v1813 = vsel %vm1810, %v1640, 0
          %v1814 = vsel %vm1810, %v1641, 0
          %s1815 = smul.u32 %s1781, 8
          %s1816 = smul.addr %s1815, 4
          %s1817 = scalar_lea.vmem [#allocation11], %s1816
          %v1818 = vld [vmem:[%s1817] sm:$0xf]
          %v1819 = vld [vmem:[%s1817 + $0x4] sm:$0xf]
          %v1820 = vld [vmem:[%s1817 + $0x8] sm:$0xf]
          %v1821 = vld [vmem:[%s1817 + $0xc] sm:$0xf]
          %v1822 = vld [vmem:[%s1817 + $0x10] sm:$0xf]
          %v1823 = vld [vmem:[%s1817 + $0x14] sm:$0xf]
          %v1824 = vld [vmem:[%s1817 + $0x18] sm:$0xf]
          %v1825 = vld [vmem:[%s1817 + $0x1c] sm:$0xf]
          %v1826 = vunpack.c.l.bf16 %v1818
          %v1827 = vunpack.c.l.bf16 %v1819
          %v1828 = vunpack.c.l.bf16 %v1820
          %v1829 = vunpack.c.l.bf16 %v1821
          %v1830 = vunpack.c.l.bf16 %v1822
          %v1831 = vunpack.c.l.bf16 %v1823
          %v1832 = vunpack.c.l.bf16 %v1824
          %v1833 = vunpack.c.l.bf16 %v1825
          %1834 = vmatprep.subr.bf16.mxu0 0
          %1835 = vmatpush1.bf16.xpose.msra.mxu0 %v1707
          %1836 = vmatprep.subr.bf16.mxu0 0
          %1837 = vmatpush1.bf16.xpose.msra.mxu0 %v1708
          %1838 = vmatprep.subr.bf16.mxu0 0
          %1839 = vmatpush1.bf16.xpose.msra.mxu0 %v1709
          %1840 = vmatprep.subr.bf16.mxu0 0
          %1841 = vmatpush1.bf16.xpose.msra.mxu0 %v1710
          %1842 = vmatprep.subr.bf16.mxu0 0
          %1843 = vmatpush1.bf16.xpose.msra.mxu0 0
          %1844 = vmatprep.subr.bf16.mxu0 0
          %1845 = vmatpush1.bf16.xpose.msra.mxu0 0
          %1846 = vmatprep.subr.bf16.mxu0 0
          %1847 = vmatpush1.bf16.xpose.msra.mxu0 0
          %1848 = vmatprep.subr.bf16.mxu0 0
          %1849 = vmatpush1.bf16.xpose.msra.mxu0 0
          %1850 = vmatprep.subr.bf16.mxu0 0
          %1851 = vmatpush1.bf16.xpose.msra.mxu0 0
          %1852 = vmatprep.subr.bf16.mxu0 0
          %1853 = vmatpush1.bf16.xpose.msra.mxu0 0
          %1854 = vmatprep.subr.bf16.mxu0 0
          %1855 = vmatpush1.bf16.xpose.msra.mxu0 0
          %1856 = vmatprep.subr.bf16.mxu0 0
          %1857 = vmatpush1.bf16.xpose.msra.mxu0 0
          %1858 = vmatprep.subr.bf16.mxu0 0
          %1859 = vmatpush1.bf16.xpose.msra.mxu0 0
          %1860 = vmatprep.subr.bf16.mxu0 0
          %1861 = vmatpush1.bf16.xpose.msra.mxu0 0
          %1862 = vmatprep.subr.bf16.mxu0 0
          %1863 = vmatpush1.bf16.xpose.msra.mxu0 0
          %1864 = vmatprep.subr.bf16.mxu0 0
          %1865 = vmatpush1.bf16.xpose.msra.mxu0 0
          %1866 = vmatprep.mubr.bf16.mxu0 0
          %1867 = vmatmul.mubr.bf16.gmra.mrb[0].mxu0 %v1811
          %v1868 = vpop.f32.mrb[0].mxu0
          %v1869 = vadd.f32 %v1826, %v1868
          %v1870 = vpop.f32.mrb[0].mxu0
          %v1871 = vpop.f32.mrb[0].mxu0
          %v1872 = vadd.f32 %v1827, %v1871
          %v1873 = vpop.f32.mrb[0].mxu0
          %1874 = vmatprep.mubr.bf16.mxu0 0
          %1875 = vmatmul.mubr.bf16.gmra.mrb[0].mxu0 %v1812
          %v1876 = vpop.f32.mrb[0].mxu0
          %v1877 = vadd.f32 %v1828, %v1876
          %v1878 = vpop.f32.mrb[0].mxu0
          %v1879 = vpop.f32.mrb[0].mxu0
          %v1880 = vadd.f32 %v1829, %v1879
          %v1881 = vpop.f32.mrb[0].mxu0
          %1882 = vmatprep.mubr.bf16.mxu0 0
          %1883 = vmatmul.mubr.bf16.gmra.mrb[0].mxu0 %v1813
          %v1884 = vpop.f32.mrb[0].mxu0
          %v1885 = vadd.f32 %v1830, %v1884
          %v1886 = vpop.f32.mrb[0].mxu0
          %v1887 = vpop.f32.mrb[0].mxu0
          %v1888 = vadd.f32 %v1831, %v1887
          %v1889 = vpop.f32.mrb[0].mxu0
          %1890 = vmatprep.mubr.bf16.mxu0 0
          %1891 = vmatmul.mubr.bf16.gmra.mrb[0].mxu0 %v1814
          %v1892 = vpop.f32.mrb[0].mxu0
          %v1893 = vadd.f32 %v1832, %v1892
          %v1894 = vpop.f32.mrb[0].mxu0
          %v1895 = vpop.f32.mrb[0].mxu0
          %v1896 = vadd.f32 %v1833, %v1895
          %v1897 = vpop.f32.mrb[0].mxu0
          %1898 = vdwg.mxu0
          %vm1899 = vcmask 523264
          %v1900 = vsel %vm1899, %v1869, -inf
          %1901 = vmax.xlane.f32.xlu0 %v1900
          %v1902 = vpop.xlane.xlu0 %1901
          %v1903 = vsel %vm1899, %v1872, -inf
          %1904 = vmax.xlane.f32.xlu0 %v1903
          %v1905 = vpop.xlane.xlu0 %1904
          %v1906 = vsel %vm1899, %v1877, -inf
          %1907 = vmax.xlane.f32.xlu0 %v1906
          %v1908 = vpop.xlane.xlu0 %1907
          %v1909 = vsel %vm1899, %v1880, -inf
          %1910 = vmax.xlane.f32.xlu0 %v1909
          %v1911 = vpop.xlane.xlu0 %1910
          %v1912 = vsel %vm1899, %v1885, -inf
          %1913 = vmax.xlane.f32.xlu0 %v1912
          %v1914 = vpop.xlane.xlu0 %1913
          %v1915 = vsel %vm1899, %v1888, -inf
          %1916 = vmax.xlane.f32.xlu0 %v1915
          %v1917 = vpop.xlane.xlu0 %1916
          %v1918 = vsel %vm1899, %v1893, -inf
          %1919 = vmax.xlane.f32.xlu0 %v1918
          %v1920 = vpop.xlane.xlu0 %1919
          %v1921 = vsel %vm1899, %v1896, -inf
          %1922 = vmax.xlane.f32.xlu0 %v1921
          %v1923 = vpop.xlane.xlu0 %1922
          %v1924 = vsub.f32 %v1869, %v1902
          %v1925 = vsub.f32 %v1872, %v1905
          %v1926 = vsub.f32 %v1877, %v1908
          %v1927 = vsub.f32 %v1880, %v1911
          %v1928 = vsub.f32 %v1885, %v1914
          %v1929 = vsub.f32 %v1888, %v1917
          %v1930 = vsub.f32 %v1893, %v1920
          %v1931 = vsub.f32 %v1896, %v1923
          %v1932 = vmul.f32 %v1924, 1.442695
          %v1933 = vpow.pop %v1932
          %v1934 = vmul.f32 %v1925, 1.442695
          %v1935 = vpow.pop %v1934
          %v1936 = vmul.f32 %v1926, 1.442695
          %v1937 = vpow.pop %v1936
          %v1938 = vmul.f32 %v1927, 1.442695
          %v1939 = vpow.pop %v1938
          %v1940 = vmul.f32 %v1928, 1.442695
          %v1941 = vpow.pop %v1940
          %v1942 = vmul.f32 %v1929, 1.442695
          %v1943 = vpow.pop %v1942
          %v1944 = vmul.f32 %v1930, 1.442695
          %v1945 = vpow.pop %v1944
          %v1946 = vmul.f32 %v1931, 1.442695
          %v1947 = vpow.pop %v1946
          %v1948 = vsel %vm1899, %v1933, 0.0
          %1949 = vadd.xlane.f32.xlu0 %v1948
          %v1950 = vpop.xlane.xlu0 %1949
          %v1951 = vsel %vm1899, %v1935, 0.0
          %1952 = vadd.xlane.f32.xlu0 %v1951
          %v1953 = vpop.xlane.xlu0 %1952
          %v1954 = vsel %vm1899, %v1937, 0.0
          %1955 = vadd.xlane.f32.xlu0 %v1954
          %v1956 = vpop.xlane.xlu0 %1955
          %v1957 = vsel %vm1899, %v1939, 0.0
          %1958 = vadd.xlane.f32.xlu0 %v1957
          %v1959 = vpop.xlane.xlu0 %1958
          %v1960 = vsel %vm1899, %v1941, 0.0
          %1961 = vadd.xlane.f32.xlu0 %v1960
          %v1962 = vpop.xlane.xlu0 %1961
          %v1963 = vsel %vm1899, %v1943, 0.0
          %1964 = vadd.xlane.f32.xlu0 %v1963
          %v1965 = vpop.xlane.xlu0 %1964
          %v1966 = vsel %vm1899, %v1945, 0.0
          %1967 = vadd.xlane.f32.xlu0 %v1966
          %v1968 = vpop.xlane.xlu0 %1967
          %v1969 = vsel %vm1899, %v1947, 0.0
          %1970 = vadd.xlane.f32.xlu0 %v1969
          %v1971 = vpop.xlane.xlu0 %1970
          %v1972 = vrcp.pop %v1950
          %v1973 = vrcp.pop %v1953
          %v1974 = vrcp.pop %v1956
          %v1975 = vrcp.pop %v1959
          %v1976 = vrcp.pop %v1962
          %v1977 = vrcp.pop %v1965
          %v1978 = vrcp.pop %v1968
          %v1979 = vrcp.pop %v1971
          %v1980 = vpack.c.bf16 %v1935, %v1933
          %v1981 = vpack.c.bf16 %v1939, %v1937
          %v1982 = vpack.c.bf16 %v1943, %v1941
          %v1983 = vpack.c.bf16 %v1947, %v1945
          %v1985 = vsel %vm1899, %v1980, 0
          %v1988 = vsel %vm1899, %v1981, 0
          %v1991 = vsel %vm1899, %v1982, 0
          %v1994 = vsel %vm1899, %v1983, 0
          %1996 = vmatprep.subr.bf16.mxu0 0
          %1997 = vmatpush1.bf16.msra.mxu0 %v1776
          %1998 = vmatprep.subr.bf16.mxu0 0
          %1999 = vmatpush1.bf16.msra.mxu0 %v1777
          %2000 = vmatprep.subr.bf16.mxu0 0
          %2001 = vmatpush1.bf16.msra.mxu0 %v1778
          %2002 = vmatprep.subr.bf16.mxu0 0
          %2003 = vmatpush1.bf16.msra.mxu0 %v1779
          %2004 = vmatprep.subr.bf16.mxu0 0
          %2005 = vmatpush1.bf16.msra.mxu0 0
          %2006 = vmatprep.subr.bf16.mxu0 0
          %2007 = vmatpush1.bf16.msra.mxu0 0
          %2008 = vmatprep.subr.bf16.mxu0 0
          %2009 = vmatpush1.bf16.msra.mxu0 0
          %2010 = vmatprep.subr.bf16.mxu0 0
          %2011 = vmatpush1.bf16.msra.mxu0 0
          %2012 = vmatprep.subr.bf16.mxu0 0
          %2013 = vmatpush1.bf16.msra.mxu0 0
          %2014 = vmatprep.subr.bf16.mxu0 0
          %2015 = vmatpush1.bf16.msra.mxu0 0
          %2016 = vmatprep.subr.bf16.mxu0 0
          %2017 = vmatpush1.bf16.msra.mxu0 0
          %2018 = vmatprep.subr.bf16.mxu0 0
          %2019 = vmatpush1.bf16.msra.mxu0 0
          %2020 = vmatprep.subr.bf16.mxu0 0
          %2021 = vmatpush1.bf16.msra.mxu0 0
          %2022 = vmatprep.subr.bf16.mxu0 0
          %2023 = vmatpush1.bf16.msra.mxu0 0
          %2024 = vmatprep.subr.bf16.mxu0 0
          %2025 = vmatpush1.bf16.msra.mxu0 0
          %2026 = vmatprep.subr.bf16.mxu0 0
          %2027 = vmatpush1.bf16.msra.mxu0 0
          %2028 = vmatprep.mubr.bf16.mxu0 0
          %2029 = vmatmul.mubr.bf16.gmra.mrb[0].mxu0 %v1985
          %v2030 = vpop.f32.mrb[0].mxu0
          %v2031 = vadd.f32 0.0, %v2030
          %v2032 = vpop.f32.mrb[0].mxu0
          %v2033 = vpop.f32.mrb[0].mxu0
          %v2034 = vadd.f32 0.0, %v2033
          %v2035 = vpop.f32.mrb[0].mxu0
          %2036 = vmatprep.mubr.bf16.mxu0 0
          %2037 = vmatmul.mubr.bf16.gmra.mrb[0].mxu0 %v1988
          %v2038 = vpop.f32.mrb[0].mxu0
          %v2039 = vadd.f32 0.0, %v2038
          %v2040 = vpop.f32.mrb[0].mxu0
          %v2041 = vpop.f32.mrb[0].mxu0
          %v2042 = vadd.f32 0.0, %v2041
          %v2043 = vpop.f32.mrb[0].mxu0
          %2044 = vmatprep.mubr.bf16.mxu0 0
          %2045 = vmatmul.mubr.bf16.gmra.mrb[0].mxu0 %v1991
          %v2046 = vpop.f32.mrb[0].mxu0
          %v2047 = vadd.f32 0.0, %v2046
          %v2048 = vpop.f32.mrb[0].mxu0
          %v2049 = vpop.f32.mrb[0].mxu0
          %v2050 = vadd.f32 0.0, %v2049
          %v2051 = vpop.f32.mrb[0].mxu0
          %2052 = vmatprep.mubr.bf16.mxu0 0
          %2053 = vmatmul.mubr.bf16.gmra.mrb[0].mxu0 %v1994
          %v2054 = vpop.f32.mrb[0].mxu0
          %v2055 = vadd.f32 0.0, %v2054
          %v2056 = vpop.f32.mrb[0].mxu0
          %v2057 = vpop.f32.mrb[0].mxu0
          %v2058 = vadd.f32 0.0, %v2057
          %v2059 = vpop.f32.mrb[0].mxu0
          %2060 = vdwg.mxu0
          %v2061 = vmul.f32 %v2031, %v1972
          %v2062 = vmul.f32 %v2034, %v1973
          %v2063 = vmul.f32 %v2039, %v1974
          %v2064 = vmul.f32 %v2042, %v1975
          %v2065 = vmul.f32 %v2047, %v1976
          %v2066 = vmul.f32 %v2050, %v1977
          %v2067 = vmul.f32 %v2055, %v1978
          %v2068 = vmul.f32 %v2058, %v1979
          %v2069 = vsel %vm1803, %v2061, 0.0
          %v2070 = vsel %vm1803, %v2062, 0.0
          %v2071 = vsel %vm1803, %v2063, 0.0
          %v2072 = vsel %vm1803, %v2064, 0.0
          %v2073 = vsel %vm1803, %v2065, 0.0
          %v2074 = vsel %vm1803, %v2066, 0.0
          %v2075 = vsel %vm1803, %v2067, 0.0
          %v2076 = vsel %vm1803, %v2068, 0.0
          %v2077 = vadd.f32 %v1786, %v2069
          %v2078 = vadd.f32 %v1787, %v2070
          %v2079 = vadd.f32 %v1788, %v2071
          %v2080 = vadd.f32 %v1789, %v2072
          %v2081 = vadd.f32 %v1790, %v2073
          %v2082 = vadd.f32 %v1791, %v2074
          %v2083 = vadd.f32 %v1792, %v2075
          %v2084 = vadd.f32 %v1793, %v2076
        $region108: #{tpu_custom_call.1} parent=67 // loop_footer
          %s1785 = sadd.s32 1, %s1781
        $region109: #{tpu_custom_call.1} parent=67 // loop_footer_branch
          %1780 = sbr.rel target = $region105
        $region110: #{tpu_custom_call.1} parent=67 // loop_exit
          _
        %v2085 = vpack.c.bf16 %v1787, %v1786
        %v2086 = vpack.c.bf16 %v1789, %v1788
        %v2087 = vpack.c.bf16 %v1791, %v1790
        %v2088 = vpack.c.bf16 %v1793, %v1792
        %2089 = vmatprep.subr.bf16.mxu0 0
        %2090 = vmatpush1.bf16.msra.mxu0 %v1488
        %2091 = vmatprep.subr.bf16.mxu0 0
        %2092 = vmatpush1.bf16.msra.mxu0 %v1489
        %2093 = vmatprep.subr.bf16.mxu0 0
        %2094 = vmatpush1.bf16.msra.mxu0 %v1490
        %2095 = vmatprep.subr.bf16.mxu0 0
        %2096 = vmatpush1.bf16.msra.mxu0 %v1491
        %2097 = vmatprep.subr.bf16.mxu0 0
        %2098 = vmatpush1.bf16.msra.mxu0 %v1492
        %2099 = vmatprep.subr.bf16.mxu0 0
        %2100 = vmatpush1.bf16.msra.mxu0 %v1493
        %2101 = vmatprep.subr.bf16.mxu0 0
        %2102 = vmatpush1.bf16.msra.mxu0 %v1494
        %2103 = vmatprep.subr.bf16.mxu0 0
        %2104 = vmatpush1.bf16.msra.mxu0 %v1495
        %2105 = vmatprep.subr.bf16.mxu0 0
        %2106 = vmatpush1.bf16.msra.mxu0 0
        %2107 = vmatprep.subr.bf16.mxu0 0
        %2108 = vmatpush1.bf16.msra.mxu0 0
        %2109 = vmatprep.subr.bf16.mxu0 0
        %2110 = vmatpush1.bf16.msra.mxu0 0
        %2111 = vmatprep.subr.bf16.mxu0 0
        %2112 = vmatpush1.bf16.msra.mxu0 0
        %2113 = vmatprep.subr.bf16.mxu0 0
        %2114 = vmatpush1.bf16.msra.mxu0 0
        %2115 = vmatprep.subr.bf16.mxu0 0
        %2116 = vmatpush1.bf16.msra.mxu0 0
        %2117 = vmatprep.subr.bf16.mxu0 0
        %2118 = vmatpush1.bf16.msra.mxu0 0
        %2119 = vmatprep.subr.bf16.mxu0 0
        %2120 = vmatpush1.bf16.msra.mxu0 0
        %2121 = vmatprep.mubr.bf16.mxu0 0
        %2122 = vmatmul.mubr.bf16.gmra.mrb[0].mxu0 %v2085
        %v2123 = vpop.f32.mrb[0].mxu0
        %v2124 = vadd.f32 %v1454, %v2123
        %v2125 = vpop.f32.mrb[0].mxu0
        %v2126 = vpop.f32.mrb[0].mxu0
        %v2127 = vadd.f32 %v1454, %v2126
        %v2128 = vpop.f32.mrb[0].mxu0
        %2129 = vmatprep.mubr.bf16.mxu0 0
        %2130 = vmatmul.mubr.bf16.gmra.mrb[0].mxu0 %v2086
        %v2131 = vpop.f32.mrb[0].mxu0
        %v2132 = vadd.f32 %v1454, %v2131
        %v2133 = vpop.f32.mrb[0].mxu0
        %v2134 = vpop.f32.mrb[0].mxu0
        %v2135 = vadd.f32 %v1454, %v2134
        %v2136 = vpop.f32.mrb[0].mxu0
        %2137 = vmatprep.mubr.bf16.mxu0 0
        %2138 = vmatmul.mubr.bf16.gmra.mrb[0].mxu0 %v2087
        %v2139 = vpop.f32.mrb[0].mxu0
        %v2140 = vadd.f32 %v1454, %v2139
        %v2141 = vpop.f32.mrb[0].mxu0
        %v2142 = vpop.f32.mrb[0].mxu0
        %v2143 = vadd.f32 %v1454, %v2142
        %v2144 = vpop.f32.mrb[0].mxu0
        %2145 = vmatprep.mubr.bf16.mxu0 0
        %2146 = vmatmul.mubr.bf16.gmra.mrb[0].mxu0 %v2088
        %v2147 = vpop.f32.mrb[0].mxu0
        %v2148 = vadd.f32 %v1454, %v2147
        %v2149 = vpop.f32.mrb[0].mxu0
        %v2150 = vpop.f32.mrb[0].mxu0
        %v2151 = vadd.f32 %v1454, %v2150
        %v2152 = vpop.f32.mrb[0].mxu0
        %2153 = vdwg.mxu0
        %2154 = vst [vmem:[%s518] sm:$0xff] %v2124
        %2155 = vst [vmem:[%s518 + $0x8] sm:$0xff] %v2127
        %2156 = vst [vmem:[%s518 + $0x10] sm:$0xff] %v2132
        %2157 = vst [vmem:[%s518 + $0x18] sm:$0xff] %v2135
        %2158 = vst [vmem:[%s518 + $0x20] sm:$0xff] %v2140
        %2159 = vst [vmem:[%s518 + $0x28] sm:$0xff] %v2143
        %2160 = vst [vmem:[%s518 + $0x30] sm:$0xff] %v2148
        %2161 = vst [vmem:[%s518 + $0x38] sm:$0xff] %v2151
        %s2162 = sand.u32 %s297, 1
        %s2163 = scalar_lea.sflag [#allocation4], %s2162
        %s2164 = sand.u32 %s297, 1
        %s2165 = smul.addr %s2164, 64
        %s2166 = scalar_lea.vmem [#allocation14], %s2165
        // Predicated region
        $region111: #{tpu_custom_call.1} parent=67 // pred_check
          %p2167 = pneg %p307
        $region112: #{tpu_custom_call.1} parent=67 // pred_check_branch
          %2169 = sbr.rel (%p2167) target = $region114
        $region113: #{tpu_custom_call.1} parent=67 // pred_region
          %s2171 = ssub.s32 1024, 1024
          %2172 = vsyncadd %s2163, %s2171
          %s2173 = smul.addr %s32, 8
          %s2174 = smul.addr %s2173, 128
          %s2175 = scalar_lea.hbm %s12, %s2174
          %s2176 = sshll.u32 %s2166, 4
          %s2177 = int_to_ptr.vmem [resolvable:$true] %s2176
          %2182 = dma.vmem_to_hbm [thread:$0]  %s2177, 1024, %s2175, %s2163, 128, 128, 8
        $region114: #{tpu_custom_call.1} parent=67 // pred_fallthru
          _
      $region68: #{tpu_custom_call.1} parent=5 // pred_fallthru
        _
      %p2183 = scmp.le.s32.totalorder 2, %s27
      // Predicated region
      $region115: #{tpu_custom_call.1} parent=5 // pred_check
        %p2184 = pneg %p2183
      $region116: #{tpu_custom_call.1} parent=5 // pred_check_branch
        %2186 = sbr.rel (%p2184) target = $region118
      $region117: #{tpu_custom_call.1} parent=5 // pred_region
        %s2187 = ssub.s32 %s27, 2
        // Predicated region
        $region119: #{tpu_custom_call.1} parent=117 // pred_check
          %p2188 = pneg %p313
        $region120: #{tpu_custom_call.1} parent=117 // pred_check_branch
          %2190 = sbr.rel (%p2188) target = $region122
        $region121: #{tpu_custom_call.1} parent=117 // pred_region
          %s2191 = sand.u32 %s298, 1
          %s2192 = scalar_lea.sflag [#allocation4], %s2191
          %s2193 = sand.u32 %s298, 1
          %s2194 = smul.addr %s2193, 64
          %s2195 = scalar_lea.vmem [#allocation14], %s2194
          %2196 = dma.done %s2192, 1024
        $region122: #{tpu_custom_call.1} parent=117 // pred_fallthru
          _
      $region118: #{tpu_custom_call.1} parent=5 // pred_fallthru
        _
    $region6: #{tpu_custom_call.1} parent=1 // loop_footer
      %s31 = sadd.s32 1, %s27
    $region7: #{tpu_custom_call.1} parent=1 // loop_footer_branch
      %26 = sbr.rel target = $region3
    $region8: #{tpu_custom_call.1} parent=1 // loop_exit
      _
    %2197 = vsyncpa [#allocation3], 1
    %s2198 = scalar_lea.sflag [#allocation3], 1
    %2199 = vsyncpa %s2198, 1
    %2200 = vsyncpa [#allocation6], 1
    %2201 = vsyncpa [#allocation9], 1
    %2202 = vsyncpa [#allocation12], 1
    %2203 = vsyncpa [#allocation4], 1
    %s2204 = scalar_lea.sflag [#allocation4], 1
    %2205 = vsyncpa %s2204, 1

</llo_original>
